<compile_context>
chip_gen: v5e
topology: v5e:2x2
jax: 0.10.0
libtpu: 0.0.40
codegen_flags: <defaults>
</compile_context>

<pallas_src>
import functools

import jax
import jax.numpy as jnp
from jax.experimental import pallas as pl
from jax.experimental.pallas import tpu as pltpu


def _round_up(x, m):
    return (x + m - 1) // m * m


# ----------------------------------------------------------------------------
# Pallas kernel: fused direct conv (+ folded BN affine + LeakyReLU epilogue)
# ----------------------------------------------------------------------------
def _fused_conv_kernel(x_ref, w_ref, shift_ref, o_ref, *, taps, apply_act):
    """One grid step = (one image, one C_out tile); full conv reduction in-kernel.

    x_ref:     (1, s*s, Hq*Wq, C_in)  bf16  phase-decomposed, flattened image
    w_ref:     (kh*kw, C_in, tn)      bf16  BN-scale-folded weights (tap-major)
    shift_ref: (1, tn)                f32   BN shift / conv bias
    o_ref:     (1, m_rows, tn)        f32   channels-last output rows
    """
    m_rows = o_ref.shape[1]
    tn = o_ref.shape[2]

    acc = jnp.zeros((m_rows, tn), jnp.float32)
    # Static, unrolled loop over the kh*kw taps.  Each tap's lhs is a
    # contiguous, statically-offset row window of the flattened phase buffer,
    # so no im2col matrix ever exists in HBM (or VMEM).
    for t, (ph, off) in enumerate(taps):
        lhs = x_ref[0, ph, off:off + m_rows, :]            # (m_rows, C_in) bf16
        acc = acc + jnp.dot(lhs, w_ref[t],
                            preferred_element_type=jnp.float32)

    y = acc + shift_ref[...]                               # (1, tn) broadcast
    if apply_act:
        y = jnp.where(y > 0.0, y, 0.1 * y)                 # LeakyReLU(0.1)
    o_ref[0] = y.astype(o_ref.dtype)


# ----------------------------------------------------------------------------
# public forward
# ----------------------------------------------------------------------------
def cnn_block_forward(x, params, *, stride=1, padding=1, bn_act=True,
                      eps=1e-5, channels_last=False):
    """CNNBlock forward.  x: (N, C_in, H, W) f32 -> (N, C_out, Hout, Wout) f32
    (or NHWC if channels_last=True)."""
    weight = params["conv_weight"]                  # (C_out, C_in, kH, kW)
    c_out, c_in, kh, kw = weight.shape
    n, _, h, w = x.shape
    s, p = int(stride), int(padding)

    h_out = (h + 2 * p - kh) // s + 1
    w_out = (w + 2 * p - kw) // s + 1

    # Phase decomposition: phase (pi, pj) holds x_pad[pi::s, pj::s], so every
    # conv tap becomes a *contiguous* (unit-stride) window inside the kernel.
    a_max = (kh - 1) // s
    b_max = (kw - 1) // s
    wq = w_out + b_max                               # phase width incl. halo
    hq = h_out + a_max + (1 if b_max > 0 else 0)     # +1 guard row keeps slices in range
    m_rows = h_out * wq                              # output rows (incl. junk cols)
    s2 = s * s

    # ---- input relayout: NCHW f32 -> padded NHWC bf16 -> (N, s^2, Hq*Wq, C_in)
    hp2, wp2 = hq * s, wq * s
    x_nhwc = jnp.transpose(x, (0, 2, 3, 1)).astype(jnp.bfloat16)
    xp = jnp.pad(x_nhwc, ((0, 0),
                          (p, max(0, hp2 - h - p)),
                          (p, max(0, wp2 - w - p)),
                          (0, 0)))[:, :hp2, :wp2, :]
    xph = (xp.reshape(n, hq, s, wq, s, c_in)
             .transpose(0, 2, 4, 1, 3, 5)
             .reshape(n, s2, hq * wq, c_in))

    # ---- fold BN scale into the weights; keep only the shift vector
    if bn_act:
        scale = params["bn_gamma"] / jnp.sqrt(params["bn_running_var"] + eps)
        shift = params["bn_beta"] - params["bn_running_mean"] * scale
    else:
        scale = jnp.ones((c_out,), jnp.float32)
        shift = params["conv_bias"].astype(jnp.float32)

    cout_pad = _round_up(c_out, 128)
    tn = next(t for t in (512, 256, 128) if cout_pad % t == 0)

    w_taps = jnp.transpose(weight, (2, 3, 1, 0)).reshape(kh * kw, c_in, c_out)
    w_taps = w_taps.astype(jnp.float32) * scale[None, None, :]
    w_taps = jnp.pad(w_taps, ((0, 0), (0, 0), (0, cout_pad - c_out)))
    w_taps = w_taps.astype(jnp.bfloat16)
    shift_p = jnp.pad(shift.astype(jnp.float32),
                      (0, cout_pad - c_out)).reshape(1, cout_pad)

    # Static tap table: (i, j) -> (phase index, row offset in flattened phase).
    taps = tuple(((i % s) * s + (j % s), (i // s) * wq + (j // s))
                 for i in range(kh) for j in range(kw))

    grid = (n, cout_pad // tn)

    x_spec = pl.BlockSpec((1, s2, hq * wq, c_in), lambda b, co: (b, 0, 0, 0))
    w_spec = pl.BlockSpec((kh * kw, c_in, tn), lambda b, co: (0, 0, co))
    shift_spec = pl.BlockSpec((1, tn), lambda b, co: (0, co))
    out_spec = pl.BlockSpec((1, m_rows, tn), lambda b, co: (b, 0, co))

    # Scoped-VMEM budget from the actual block footprint (double-buffered
    # inputs + output block + f32 accumulator), clamped to 32..64 MiB so the
    # same config is valid on v5e/v6e (128 MiB physical) and v7x (64 MiB).
    x_blk = s2 * hq * wq * c_in * 2
    w_blk = kh * kw * c_in * tn * 2
    o_blk = m_rows * tn * 4
    need = 2 * (x_blk + w_blk + tn * 4) + 3 * o_blk + (2 << 20)
    vmem_limit = int(min(max(need, 32 << 20), 64 << 20))

    flops = 2 * n * m_rows * (kh * kw * c_in) * cout_pad
    bytes_accessed = int(xph.size * 2 + w_taps.size * 2 + shift_p.size * 4
                         + n * m_rows * cout_pad * 4)

    kernel = functools.partial(_fused_conv_kernel, taps=taps, apply_act=bn_act)

    out = pl.pallas_call(
        kernel,
        out_shape=jax.ShapeDtypeStruct((n, m_rows, cout_pad), jnp.float32),
        grid_spec=pltpu.PrefetchScalarGridSpec(
            num_scalar_prefetch=0,
            grid=grid,
            in_specs=[x_spec, w_spec, shift_spec],
            out_specs=out_spec,
        ),
        compiler_params=pltpu.CompilerParams(
            dimension_semantics=("parallel", "parallel"),
            vmem_limit_bytes=vmem_limit),
        cost_estimate=pl.CostEstimate(flops=flops, transcendentals=0,
                                      bytes_accessed=bytes_accessed),
    )(xph, w_taps, shift_p)

    # Drop the (tiny) junk columns / padded channels; kernel output is already
    # lane-dense channels-last.
    out = out.reshape(n, h_out, wq, cout_pad)[:, :, :w_out, :c_out]
    if channels_last:
        return out                                   # NHWC
    return jnp.transpose(out, (0, 3, 1, 2))          # NCHW to match PyTorch


# ----------------------------------------------------------------------------
# params / reference
# ----------------------------------------------------------------------------
def init_params(key, in_channels, out_channels, kernel_size, bn_act=True):
    k0, k1, k2, k3 = jax.random.split(key, 4)
    params = {
        "conv_weight": 0.1 * jax.random.normal(
            k0, (out_channels, in_channels, kernel_size, kernel_size),
            jnp.float32),
    }
    if bn_act:
        params["bn_gamma"] = 1.0 + 0.05 * jax.random.normal(
            k1, (out_channels,), jnp.float32)
        params["bn_beta"] = 0.05 * jax.random.normal(
            k2, (out_channels,), jnp.float32)
        params["bn_running_mean"] = 0.1 * jax.random.normal(
            k3, (out_channels,), jnp.float32)
        params["bn_running_var"] = jnp.ones((out_channels,), jnp.float32)
    else:
        params["conv_bias"] = 0.05 * jax.random.normal(
            k1, (out_channels,), jnp.float32)
    return params


def _reference(x, params, *, stride, padding, bn_act, eps=1e-5):
    """Pure-JAX f32 reference for validation."""
    w = params["conv_weight"]
    y = jax.lax.conv_general_dilated(
        x, w, window_strides=(stride, stride),
        padding=[(padding, padding), (padding, padding)],
        dimension_numbers=("NCHW", "OIHW", "NCHW"))
    if bn_act:
        scale = params["bn_gamma"] / jnp.sqrt(params["bn_running_var"] + eps)
        shift = params["bn_beta"] - params["bn_running_mean"] * scale
        y = y * scale[None, :, None, None] + shift[None, :, None, None]
        y = jnp.where(y > 0, y, 0.1 * y)
    else:
        y = y + params["conv_bias"][None, :, None, None]
    return y


if __name__ == "__main__":
    key = jax.random.PRNGKey(0)
    kx1, kp1, kx2, kp2, kx3, kp3 = jax.random.split(key, 6)

    # bf16 matmul operands with f32 accumulation -> loosened tolerance.
    ATOL = RTOL = 5e-2

    # Case 1: CNNBlock(4, 8, kernel_size=3, stride=1, padding=1), bn_act=True.
    x1 = jax.random.normal(kx1, (2, 4, 16, 16), jnp.float32)
    p1 = init_params(kp1, 4, 8, 3, bn_act=True)
    out1 = jax.block_until_ready(
        cnn_block_forward(x1, p1, stride=1, padding=1, bn_act=True))
    ref1 = _reference(x1, p1, stride=1, padding=1, bn_act=True)
    assert out1.shape == (2, 8, 16, 16), out1.shape
    assert jnp.allclose(out1, ref1, atol=ATOL, rtol=RTOL), (
        "case1 mismatch, max abs err = %f" % float(jnp.max(jnp.abs(out1 - ref1))))

    # Case 2: CNNBlock(32, 16, kernel_size=3, stride=2, padding=1),
    # bn_act=False.  Exercises the stride-2 phase decomposition + bias path.
    x2 = jax.random.normal(kx2, (2, 32, 64, 64), jnp.float32)
    p2 = init_params(kp2, 32, 16, 3, bn_act=False)
    out2 = jax.block_until_ready(
        cnn_block_forward(x2, p2, stride=2, padding=1, bn_act=False))
    ref2 = _reference(x2, p2, stride=2, padding=1, bn_act=False)
    assert out2.shape == (2, 16, 32, 32), out2.shape
    assert jnp.allclose(out2, ref2, atol=ATOL, rtol=RTOL), (
        "case2 mismatch, max abs err = %f" % float(jnp.max(jnp.abs(out2 - ref2))))

    # Case 3: CNNBlock(8, 16, kernel_size=1, stride=1, padding=0), bn_act=True
    # (YOLO bottleneck-style 1x1 conv).
    x3 = jax.random.normal(kx3, (2, 8, 16, 16), jnp.float32)
    p3 = init_params(kp3, 8, 16, 1, bn_act=True)
    out3 = jax.block_until_ready(
        cnn_block_forward(x3, p3, stride=1, padding=0, bn_act=True))
    ref3 = _reference(x3, p3, stride=1, padding=0, bn_act=True)
    assert out3.shape == (2, 16, 16, 16), out3.shape
    assert jnp.allclose(out3, ref3, atol=ATOL, rtol=RTOL), (
        "case3 mismatch, max abs err = %f" % float(jnp.max(jnp.abs(out3 - ref3))))

    print("KERNEL_OK")
</pallas_src>

<mosaic_0001>
module attributes {stable_mosaic.version = 11 : i64} {
  func.func @_fused_conv_kernel(%arg0: i32, %arg1: i32, %arg2: memref<1x1x342x4xbf16, #tpu.memory_space<vmem>>, %arg3: memref<9x4x128xbf16, #tpu.memory_space<vmem>>, %arg4: memref<1x128xf32, #tpu.memory_space<vmem>>, %arg5: memref<1x288x128xf32, #tpu.memory_space<vmem>>) attributes {dimension_semantics = [#tpu.dimension_semantics<parallel>, #tpu.dimension_semantics<parallel>], iteration_bounds = array<i64: 2, 1>, scalar_prefetch = 0 : i64, scratch_operands = 0 : i64, tpu.core_type = #tpu.core_type<tc>, window_params = [{transform_indices = @transform_0, window_bounds = array<i64: 1, 1, 342, 4>}, {transform_indices = @transform_1, window_bounds = array<i64: 9, 4, 128>}, {transform_indices = @transform_2, window_bounds = array<i64: 1, 128>}, {transform_indices = @transform_3, window_bounds = array<i64: 1, 288, 128>}]} {
    %cst = arith.constant 0.000000e+00 : f32
    %0 = vector.broadcast %cst : f32 to vector<288x128xf32>
    %c0 = arith.constant 0 : index
    %c0_0 = arith.constant 0 : index
    %c0_1 = arith.constant 0 : index
    %c0_2 = arith.constant 0 : index
    %1 = vector.load %arg2[%c0, %c0_0, %c0_1, %c0_2] : memref<1x1x342x4xbf16, #tpu.memory_space<vmem>>, vector<1x1x288x4xbf16>
    %2 = vector.shape_cast %1 : vector<1x1x288x4xbf16> to vector<288x4xbf16>
    %c0_3 = arith.constant 0 : index
    %c0_4 = arith.constant 0 : index
    %c0_5 = arith.constant 0 : index
    %3 = vector.load %arg3[%c0_3, %c0_4, %c0_5] : memref<9x4x128xbf16, #tpu.memory_space<vmem>>, vector<1x4x128xbf16>
    %4 = vector.shape_cast %3 : vector<1x4x128xbf16> to vector<4x128xbf16>
    %cst_6 = arith.constant dense<0.000000e+00> : vector<288x128xf32>
    %5 = tpu.matmul %2, %4, %cst_6 {dimension_numbers = #tpu.dot_dimension_numbers<[1], [0], [0], [1], [0, 0, 1, 1], [], []>} : vector<288x4xbf16>, vector<4x128xbf16>, vector<288x128xf32> -> vector<288x128xf32>
    %6 = arith.addf %0, %5 : vector<288x128xf32>
    %c0_7 = arith.constant 0 : index
    %c0_8 = arith.constant 0 : index
    %c1 = arith.constant 1 : index
    %c0_9 = arith.constant 0 : index
    %7 = vector.load %arg2[%c0_7, %c0_8, %c1, %c0_9] : memref<1x1x342x4xbf16, #tpu.memory_space<vmem>>, vector<1x1x288x4xbf16>
    %8 = vector.shape_cast %7 : vector<1x1x288x4xbf16> to vector<288x4xbf16>
    %c1_10 = arith.constant 1 : index
    %c0_11 = arith.constant 0 : index
    %c0_12 = arith.constant 0 : index
    %9 = vector.load %arg3[%c1_10, %c0_11, %c0_12] : memref<9x4x128xbf16, #tpu.memory_space<vmem>>, vector<1x4x128xbf16>
    %10 = vector.shape_cast %9 : vector<1x4x128xbf16> to vector<4x128xbf16>
    %cst_13 = arith.constant dense<0.000000e+00> : vector<288x128xf32>
    %11 = tpu.matmul %8, %10, %cst_13 {dimension_numbers = #tpu.dot_dimension_numbers<[1], [0], [0], [1], [0, 0, 1, 1], [], []>} : vector<288x4xbf16>, vector<4x128xbf16>, vector<288x128xf32> -> vector<288x128xf32>
    %12 = arith.addf %6, %11 : vector<288x128xf32>
    %c0_14 = arith.constant 0 : index
    %c0_15 = arith.constant 0 : index
    %c2 = arith.constant 2 : index
    %c0_16 = arith.constant 0 : index
    %13 = vector.load %arg2[%c0_14, %c0_15, %c2, %c0_16] : memref<1x1x342x4xbf16, #tpu.memory_space<vmem>>, vector<1x1x288x4xbf16>
    %14 = vector.shape_cast %13 : vector<1x1x288x4xbf16> to vector<288x4xbf16>
    %c2_17 = arith.constant 2 : index
    %c0_18 = arith.constant 0 : index
    %c0_19 = arith.constant 0 : index
    %15 = vector.load %arg3[%c2_17, %c0_18, %c0_19] : memref<9x4x128xbf16, #tpu.memory_space<vmem>>, vector<1x4x128xbf16>
    %16 = vector.shape_cast %15 : vector<1x4x128xbf16> to vector<4x128xbf16>
    %cst_20 = arith.constant dense<0.000000e+00> : vector<288x128xf32>
    %17 = tpu.matmul %14, %16, %cst_20 {dimension_numbers = #tpu.dot_dimension_numbers<[1], [0], [0], [1], [0, 0, 1, 1], [], []>} : vector<288x4xbf16>, vector<4x128xbf16>, vector<288x128xf32> -> vector<288x128xf32>
    %18 = arith.addf %12, %17 : vector<288x128xf32>
    %c0_21 = arith.constant 0 : index
    %c0_22 = arith.constant 0 : index
    %c18 = arith.constant 18 : index
    %c0_23 = arith.constant 0 : index
    %19 = vector.load %arg2[%c0_21, %c0_22, %c18, %c0_23] : memref<1x1x342x4xbf16, #tpu.memory_space<vmem>>, vector<1x1x288x4xbf16>
    %20 = vector.shape_cast %19 : vector<1x1x288x4xbf16> to vector<288x4xbf16>
    %c3 = arith.constant 3 : index
    %c0_24 = arith.constant 0 : index
    %c0_25 = arith.constant 0 : index
    %21 = vector.load %arg3[%c3, %c0_24, %c0_25] : memref<9x4x128xbf16, #tpu.memory_space<vmem>>, vector<1x4x128xbf16>
    %22 = vector.shape_cast %21 : vector<1x4x128xbf16> to vector<4x128xbf16>
    %cst_26 = arith.constant dense<0.000000e+00> : vector<288x128xf32>
    %23 = tpu.matmul %20, %22, %cst_26 {dimension_numbers = #tpu.dot_dimension_numbers<[1], [0], [0], [1], [0, 0, 1, 1], [], []>} : vector<288x4xbf16>, vector<4x128xbf16>, vector<288x128xf32> -> vector<288x128xf32>
    %24 = arith.addf %18, %23 : vector<288x128xf32>
    %c0_27 = arith.constant 0 : index
    %c0_28 = arith.constant 0 : index
    %c19 = arith.constant 19 : index
    %c0_29 = arith.constant 0 : index
    %25 = vector.load %arg2[%c0_27, %c0_28, %c19, %c0_29] : memref<1x1x342x4xbf16, #tpu.memory_space<vmem>>, vector<1x1x288x4xbf16>
    %26 = vector.shape_cast %25 : vector<1x1x288x4xbf16> to vector<288x4xbf16>
    %c4 = arith.constant 4 : index
    %c0_30 = arith.constant 0 : index
    %c0_31 = arith.constant 0 : index
    %27 = vector.load %arg3[%c4, %c0_30, %c0_31] : memref<9x4x128xbf16, #tpu.memory_space<vmem>>, vector<1x4x128xbf16>
    %28 = vector.shape_cast %27 : vector<1x4x128xbf16> to vector<4x128xbf16>
    %cst_32 = arith.constant dense<0.000000e+00> : vector<288x128xf32>
    %29 = tpu.matmul %26, %28, %cst_32 {dimension_numbers = #tpu.dot_dimension_numbers<[1], [0], [0], [1], [0, 0, 1, 1], [], []>} : vector<288x4xbf16>, vector<4x128xbf16>, vector<288x128xf32> -> vector<288x128xf32>
    %30 = arith.addf %24, %29 : vector<288x128xf32>
    %c0_33 = arith.constant 0 : index
    %c0_34 = arith.constant 0 : index
    %c20 = arith.constant 20 : index
    %c0_35 = arith.constant 0 : index
    %31 = vector.load %arg2[%c0_33, %c0_34, %c20, %c0_35] : memref<1x1x342x4xbf16, #tpu.memory_space<vmem>>, vector<1x1x288x4xbf16>
    %32 = vector.shape_cast %31 : vector<1x1x288x4xbf16> to vector<288x4xbf16>
    %c5 = arith.constant 5 : index
    %c0_36 = arith.constant 0 : index
    %c0_37 = arith.constant 0 : index
    %33 = vector.load %arg3[%c5, %c0_36, %c0_37] : memref<9x4x128xbf16, #tpu.memory_space<vmem>>, vector<1x4x128xbf16>
    %34 = vector.shape_cast %33 : vector<1x4x128xbf16> to vector<4x128xbf16>
    %cst_38 = arith.constant dense<0.000000e+00> : vector<288x128xf32>
    %35 = tpu.matmul %32, %34, %cst_38 {dimension_numbers = #tpu.dot_dimension_numbers<[1], [0], [0], [1], [0, 0, 1, 1], [], []>} : vector<288x4xbf16>, vector<4x128xbf16>, vector<288x128xf32> -> vector<288x128xf32>
    %36 = arith.addf %30, %35 : vector<288x128xf32>
    %c0_39 = arith.constant 0 : index
    %c0_40 = arith.constant 0 : index
    %c36 = arith.constant 36 : index
    %c0_41 = arith.constant 0 : index
    %37 = vector.load %arg2[%c0_39, %c0_40, %c36, %c0_41] : memref<1x1x342x4xbf16, #tpu.memory_space<vmem>>, vector<1x1x288x4xbf16>
    %38 = vector.shape_cast %37 : vector<1x1x288x4xbf16> to vector<288x4xbf16>
    %c6 = arith.constant 6 : index
    %c0_42 = arith.constant 0 : index
    %c0_43 = arith.constant 0 : index
    %39 = vector.load %arg3[%c6, %c0_42, %c0_43] : memref<9x4x128xbf16, #tpu.memory_space<vmem>>, vector<1x4x128xbf16>
    %40 = vector.shape_cast %39 : vector<1x4x128xbf16> to vector<4x128xbf16>
    %cst_44 = arith.constant dense<0.000000e+00> : vector<288x128xf32>
    %41 = tpu.matmul %38, %40, %cst_44 {dimension_numbers = #tpu.dot_dimension_numbers<[1], [0], [0], [1], [0, 0, 1, 1], [], []>} : vector<288x4xbf16>, vector<4x128xbf16>, vector<288x128xf32> -> vector<288x128xf32>
    %42 = arith.addf %36, %41 : vector<288x128xf32>
    %c0_45 = arith.constant 0 : index
    %c0_46 = arith.constant 0 : index
    %c37 = arith.constant 37 : index
    %c0_47 = arith.constant 0 : index
    %43 = vector.load %arg2[%c0_45, %c0_46, %c37, %c0_47] : memref<1x1x342x4xbf16, #tpu.memory_space<vmem>>, vector<1x1x288x4xbf16>
    %44 = vector.shape_cast %43 : vector<1x1x288x4xbf16> to vector<288x4xbf16>
    %c7 = arith.constant 7 : index
    %c0_48 = arith.constant 0 : index
    %c0_49 = arith.constant 0 : index
    %45 = vector.load %arg3[%c7, %c0_48, %c0_49] : memref<9x4x128xbf16, #tpu.memory_space<vmem>>, vector<1x4x128xbf16>
    %46 = vector.shape_cast %45 : vector<1x4x128xbf16> to vector<4x128xbf16>
    %cst_50 = arith.constant dense<0.000000e+00> : vector<288x128xf32>
    %47 = tpu.matmul %44, %46, %cst_50 {dimension_numbers = #tpu.dot_dimension_numbers<[1], [0], [0], [1], [0, 0, 1, 1], [], []>} : vector<288x4xbf16>, vector<4x128xbf16>, vector<288x128xf32> -> vector<288x128xf32>
    %48 = arith.addf %42, %47 : vector<288x128xf32>
    %c0_51 = arith.constant 0 : index
    %c0_52 = arith.constant 0 : index
    %c38 = arith.constant 38 : index
    %c0_53 = arith.constant 0 : index
    %49 = vector.load %arg2[%c0_51, %c0_52, %c38, %c0_53] : memref<1x1x342x4xbf16, #tpu.memory_space<vmem>>, vector<1x1x288x4xbf16>
    %50 = vector.shape_cast %49 : vector<1x1x288x4xbf16> to vector<288x4xbf16>
    %c8 = arith.constant 8 : index
    %c0_54 = arith.constant 0 : index
    %c0_55 = arith.constant 0 : index
    %51 = vector.load %arg3[%c8, %c0_54, %c0_55] : memref<9x4x128xbf16, #tpu.memory_space<vmem>>, vector<1x4x128xbf16>
    %52 = vector.shape_cast %51 : vector<1x4x128xbf16> to vector<4x128xbf16>
    %cst_56 = arith.constant dense<0.000000e+00> : vector<288x128xf32>
    %53 = tpu.matmul %50, %52, %cst_56 {dimension_numbers = #tpu.dot_dimension_numbers<[1], [0], [0], [1], [0, 0, 1, 1], [], []>} : vector<288x4xbf16>, vector<4x128xbf16>, vector<288x128xf32> -> vector<288x128xf32>
    %54 = arith.addf %48, %53 : vector<288x128xf32>
    %c0_57 = arith.constant 0 : index
    %c0_58 = arith.constant 0 : index
    %55 = vector.load %arg4[%c0_57, %c0_58] : memref<1x128xf32, #tpu.memory_space<vmem>>, vector<1x128xf32>
    %56 = vector.broadcast %55 : vector<1x128xf32> to vector<288x128xf32>
    %57 = arith.addf %54, %56 : vector<288x128xf32>
    %cst_59 = arith.constant 0.000000e+00 : f32
    %58 = vector.broadcast %cst_59 : f32 to vector<288x128xf32>
    %59 = arith.cmpf ogt, %57, %58 : vector<288x128xf32>
    %cst_60 = arith.constant 1.000000e-01 : f32
    %60 = vector.broadcast %cst_60 : f32 to vector<288x128xf32>
    %61 = arith.mulf %60, %57 : vector<288x128xf32>
    %62 = arith.select %59, %57, %61 : vector<288x128xi1>, vector<288x128xf32>
    %c0_61 = arith.constant 0 : index
    %c0_62 = arith.constant 0 : index
    %c0_63 = arith.constant 0 : index
    %63 = vector.load %arg5[%c0_61, %c0_62, %c0_63] : memref<1x288x128xf32, #tpu.memory_space<vmem>>, vector<1x288x128xf32>
    %64 = vector.shape_cast %63 : vector<1x288x128xf32> to vector<288x128xf32>
    %65 = vector.shape_cast %62 : vector<288x128xf32> to vector<1x288x128xf32>
    tpu.vector_store %arg5[%c0_61, %c0_62, %c0_63], %65 {strides = array<i32>} : memref<1x288x128xf32, #tpu.memory_space<vmem>>, vector<1x288x128xf32>,
    return
  }
  func.func @transform_0(%arg0: i32, %arg1: i32) -> (i32, i32, i32, i32) {
    %c0_i32 = arith.constant 0 : i32
    %c0_i32_0 = arith.constant 0 : i32
    %c0_i32_1 = arith.constant 0 : i32
    %c0_i32_2 = arith.constant 0 : i32
    return %arg0, %c0_i32, %c0_i32_0, %c0_i32_1 : i32, i32, i32, i32
  }
  func.func @transform_1(%arg0: i32, %arg1: i32) -> (i32, i32, i32) {
    %c0_i32 = arith.constant 0 : i32
    %c0_i32_0 = arith.constant 0 : i32
    %c0_i32_1 = arith.constant 0 : i32
    return %c0_i32, %c0_i32_0, %arg1 : i32, i32, i32
  }
  func.func @transform_2(%arg0: i32, %arg1: i32) -> (i32, i32) {
    %c0_i32 = arith.constant 0 : i32
    %c0_i32_0 = arith.constant 0 : i32
    return %c0_i32, %arg1 : i32, i32
  }
  func.func @transform_3(%arg0: i32, %arg1: i32) -> (i32, i32, i32) {
    %c0_i32 = arith.constant 0 : i32
    %c0_i32_0 = arith.constant 0 : i32
    return %arg0, %c0_i32, %arg1 : i32, i32, i32
  }
}

</mosaic_0001>

<llo_original>
// kernel: tpu_custom_call.1
$region0: #{tpu_custom_call.1}
  #allocation0 [shape = 'u32[]', space=smem, size = 0x4, offset = 0x4, fixed_abs, tag = 'smem constant byte address 0x4 - core index']
  #allocation1 [shape = 'u32[72,128]{1,0:T(1,128)}', space=vmem, size = 0x9000, scoped, tag = 'internal scratch']
  %s0 = inlined_call_operand.vmem [shape: bf16[2,1,342,4], index: 0, kind: input, shape index: {}]
  %s1 = inlined_call_operand.vmem [shape: bf16[9,4,128], index: 1, kind: input, shape index: {}]
  %s2 = inlined_call_operand.vmem [shape: f32[1,128], index: 2, kind: input, shape index: {}]
  %s3 = inlined_call_operand.hbm [shape: f32[2,288,128], index: 3, kind: output, shape index: {}]
  %s4 = sld [smem:[#allocation0]]
  $region45: #{tpu_custom_call.1} parent=0
    _
  %s6 = ssub.s32 1, %s4
  %s7 = scalar_select 0, %s6, %s4
  $region1: #{tpu_custom_call.1} parent=0
    #allocation2 [shape = 'u8[294912]{0}', space=vmem, size = 0x48000, scoped, tag = 'output window, operand 0']
    #allocation3 [shape = 's32[2]{0}', space=sflag, size = 0x8, scoped, tag = 'scoped memory for tpu_custom_call.1']
    %8 = vsyncpa [#allocation3], 0
    %s9 = scalar_lea.sflag [#allocation3], 1
    %10 = vsyncpa %s9, 0
    loop: start=0, step=1, limit=4
    $region2: #{tpu_custom_call.1} parent=1 // loop_pre_header
      _
    $region3: #{tpu_custom_call.1} parent=1 // loop_header
      %s12 = sphi 0, %s16
      %p13 = scmp.ge.s32.totalorder %s12, 4
      %s19 = sphi 0, %s31
      %s20 = sphi 0, %s27
      %s21 = sphi 0, %s19
      %s22 = sphi 0, %s20
      %s23 = sphi 0, %s21
      %s24 = sphi 0, %s22
      %s34 = sphi 0, %s36
      %s37 = sphi 0, %s34
      %s38 = sphi 0, %s37
      %s54 = sphi 0, %s38
      %s60 = sphi 0, %s62
      %s63 = sphi 0, %s60
      %s64 = sphi 0, %s63
      %s80 = sphi 0, %s64
      %s86 = sphi 0, %s88
      %s89 = sphi 0, %s86
      %s90 = sphi 0, %s89
      %s106 = sphi 0, %s90
      %s114 = sphi 0, %s116
      %s117 = sphi 0, %s114
      %s118 = sphi 0, %s117
      %s134 = sphi 0, %s118
    $region4: #{tpu_custom_call.1} parent=1 // loop_header_branch
      %15 = sbr.rel (%p13) target = $region8
    $region5: #{tpu_custom_call.1} parent=1 // loop_body
      %s17 = ssub.s32 %s12, 1
      %s18 = ssub.s32 %s12, 2
      %s25 = sadd.s32 1, %s20
      %p26 = scmp.ge.s32.totalorder %s25, 1
      %s27 = scalar_select %p26, 0, %s25
      %s28 = sadd.s32 1, %s19
      %s29 = scalar_select %p26, %s28, %s19
      %p30 = scmp.ge.s32.totalorder %s29, 2
      %s31 = scalar_select %p30, 0, %s29
      %s32 = ssub.s32 %s19, %s31
      %p33 = scmp.eq.s32.totalorder %s32, 0
      %s35 = sadd.s32 %s34, 1
      %s36 = scalar_select %p33, %s34, %s35
      %p39 = pneg %p33
      %p40 = scmp.eq.s32.totalorder %s12, 1
      %p41 = por %p39, %p40
      %p42 = scmp.ne.s32.totalorder %s34, %s37
      %p43 = scmp.eq.s32.totalorder %s12, 0
      %p44 = por %p42, %p43
      %p45 = scmp.ne.s32.totalorder %s34, %s37
      %p46 = scmp.eq.s32.totalorder %s17, 1
      %p47 = por %p45, %p46
      %p48 = scmp.ne.s32.totalorder %s37, %s38
      %p49 = scmp.eq.s32.totalorder %s17, 0
      %p50 = por %p48, %p49
      %p51 = scmp.ne.s32.totalorder %s37, %s38
      %p52 = scmp.eq.s32.totalorder %s18, 1
      %p53 = por %p51, %p52
      %p55 = scmp.ne.s32.totalorder %s38, %s54
      %p56 = scmp.eq.s32.totalorder %s18, 0
      %p57 = por %p55, %p56
      %s58 = ssub.s32 %s20, %s27
      %p59 = scmp.eq.s32.totalorder %s58, 0
      %s61 = sadd.s32 %s60, 1
      %s62 = scalar_select %p59, %s60, %s61
      %p65 = pneg %p59
      %p66 = scmp.eq.s32.totalorder %s12, 1
      %p67 = por %p65, %p66
      %p68 = scmp.ne.s32.totalorder %s60, %s63
      %p69 = scmp.eq.s32.totalorder %s12, 0
      %p70 = por %p68, %p69
      %p71 = scmp.ne.s32.totalorder %s60, %s63
      %p72 = scmp.eq.s32.totalorder %s17, 1
      %p73 = por %p71, %p72
      %p74 = scmp.ne.s32.totalorder %s63, %s64
      %p75 = scmp.eq.s32.totalorder %s17, 0
      %p76 = por %p74, %p75
      %p77 = scmp.ne.s32.totalorder %s63, %s64
      %p78 = scmp.eq.s32.totalorder %s18, 1
      %p79 = por %p77, %p78
      %p81 = scmp.ne.s32.totalorder %s64, %s80
      %p82 = scmp.eq.s32.totalorder %s18, 0
      %p83 = por %p81, %p82
      %s84 = ssub.s32 %s20, %s27
      %p85 = scmp.eq.s32.totalorder %s84, 0
      %s87 = sadd.s32 %s86, 1
      %s88 = scalar_select %p85, %s86, %s87
      %p91 = pneg %p85
      %p92 = scmp.eq.s32.totalorder %s12, 1
      %p93 = por %p91, %p92
      %p94 = scmp.ne.s32.totalorder %s86, %s89
      %p95 = scmp.eq.s32.totalorder %s12, 0
      %p96 = por %p94, %p95
      %p97 = scmp.ne.s32.totalorder %s86, %s89
      %p98 = scmp.eq.s32.totalorder %s17, 1
      %p99 = por %p97, %p98
      %p100 = scmp.ne.s32.totalorder %s89, %s90
      %p101 = scmp.eq.s32.totalorder %s17, 0
      %p102 = por %p100, %p101
      %p103 = scmp.ne.s32.totalorder %s89, %s90
      %p104 = scmp.eq.s32.totalorder %s18, 1
      %p105 = por %p103, %p104
      %p107 = scmp.ne.s32.totalorder %s90, %s106
      %p108 = scmp.eq.s32.totalorder %s18, 0
      %p109 = por %p107, %p108
      %s110 = ssub.s32 %s19, %s31
      %s111 = ssub.s32 %s20, %s27
      %s112 = sor.u32 %s110, %s111
      %p113 = scmp.eq.s32.totalorder %s112, 0
      %s115 = sadd.s32 %s114, 1
      %s116 = scalar_select %p113, %s114, %s115
      %p119 = pneg %p113
      %p120 = scmp.eq.s32.totalorder %s12, 1
      %p121 = por %p119, %p120
      %p122 = scmp.ne.s32.totalorder %s114, %s117
      %p123 = scmp.eq.s32.totalorder %s12, 0
      %p124 = por %p122, %p123
      %p125 = scmp.ne.s32.totalorder %s114, %s117
      %p126 = scmp.eq.s32.totalorder %s17, 1
      %p127 = por %p125, %p126
      %p128 = scmp.ne.s32.totalorder %s117, %s118
      %p129 = scmp.eq.s32.totalorder %s17, 0
      %p130 = por %p128, %p129
      %p131 = scmp.ne.s32.totalorder %s117, %s118
      %p132 = scmp.eq.s32.totalorder %s18, 1
      %p133 = por %p131, %p132
      %p135 = scmp.ne.s32.totalorder %s118, %s134
      %p136 = scmp.eq.s32.totalorder %s18, 0
      %p137 = por %p135, %p136
      %p138 = scmp.le.s32.totalorder 1, %s12
      %p139 = scmp.lt.s32.totalorder %s12, 3
      %p140 = pnand %p138, %p139
      %p141 = pneg %p140
      // Predicated region
      $region9: #{tpu_custom_call.1} parent=5 // pred_check
        _
      $region10: #{tpu_custom_call.1} parent=5 // pred_check_branch
        %143 = sbr.rel (%p140) target = $region12
      $region11: #{tpu_custom_call.1} parent=5 // pred_region
        %s144 = ssub.s32 %s12, 1
        // Predicated region
        $region13: #{tpu_custom_call.1} parent=11 // pred_check
          %p145 = pneg %p76
        $region14: #{tpu_custom_call.1} parent=11 // pred_check_branch
          %147 = sbr.rel (%p145) target = $region16
        $region15: #{tpu_custom_call.1} parent=11 // pred_region
          %p148 = scmp.lt.s32.totalorder %s22, 0
          %s149 = scalar_select %p148, %s22, 0
          %s150 = smul.addr %s149, 2
          %s151 = scalar_lea.vmem %s1, %s150
        $region16: #{tpu_custom_call.1} parent=11 // pred_fallthru
          _
        // Predicated region
        $region17: #{tpu_custom_call.1} parent=11 // pred_check
          %p152 = pneg %p102
        $region18: #{tpu_custom_call.1} parent=11 // pred_check_branch
          %154 = sbr.rel (%p152) target = $region20
        $region19: #{tpu_custom_call.1} parent=11 // pred_region
          %p155 = scmp.lt.s32.totalorder %s22, 0
          %s156 = scalar_select %p155, %s22, 0
          %s157 = scalar_lea.vmem %s2, %s156
        $region20: #{tpu_custom_call.1} parent=11 // pred_fallthru
          _
      $region12: #{tpu_custom_call.1} parent=5 // pred_fallthru
        _
      %p158 = scmp.lt.s32.totalorder %s12, 2
      // Predicated region
      $region21: #{tpu_custom_call.1} parent=5 // pred_check
        %p159 = pneg %p158
      $region22: #{tpu_custom_call.1} parent=5 // pred_check_branch
        %161 = sbr.rel (%p159) target = $region24
      $region23: #{tpu_custom_call.1} parent=5 // pred_region
        // Predicated region
        $region25: #{tpu_custom_call.1} parent=23 // pred_check
          %p162 = pneg %p44
        $region26: #{tpu_custom_call.1} parent=23 // pred_check_branch
          %164 = sbr.rel (%p162) target = $region28
        $region27: #{tpu_custom_call.1} parent=23 // pred_region
          %p165 = scmp.lt.s32.totalorder %s19, 1
          %s166 = scalar_select %p165, %s19, 1
          %s167 = smul.addr %s166, 43
          %s168 = smul.addr %s167, 4
          %s169 = scalar_lea.vmem %s0, %s168
        $region28: #{tpu_custom_call.1} parent=23 // pred_fallthru
          _
      $region24: #{tpu_custom_call.1} parent=5 // pred_fallthru
        _
      %p170 = scmp.le.s32.totalorder 1, %s12
      %p171 = scmp.lt.s32.totalorder %s12, 3
      %p172 = pnand %p170, %p171
      %p173 = pneg %p172
      // Predicated region
      $region29: #{tpu_custom_call.1} parent=5 // pred_check
        _
      $region30: #{tpu_custom_call.1} parent=5 // pred_check_branch
        %175 = sbr.rel (%p172) target = $region32
      $region31: #{tpu_custom_call.1} parent=5 // pred_region
        %s176 = ssub.s32 %s12, 1
        %p177 = scmp.lt.s32.totalorder %s21, 1
        %s178 = scalar_select %p177, %s21, 1
        %s179 = smul.addr %s178, 43
        %s180 = smul.addr %s179, 4
        %s181 = scalar_lea.vmem %s0, %s180
        %p182 = pneg %p50
        %p183 = pneg %p47
        %p184 = scmp.lt.s32.totalorder %s22, 0
        %s185 = scalar_select %p184, %s22, 0
        %s186 = smul.addr %s185, 2
        %s187 = scalar_lea.vmem %s1, %s186
        %p188 = pneg %p76
        %p189 = pneg %p73
        %p190 = scmp.lt.s32.totalorder %s22, 0
        %s191 = scalar_select %p190, %s22, 0
        %s192 = scalar_lea.vmem %s2, %s191
        %p193 = pneg %p102
        %p194 = pneg %p99
        %p195 = pneg %p130
        %p196 = pneg %p127
        %s197 = sand.u32 %s117, 1
        %s198 = scalar_lea.sflag [#allocation3], %s197
        %s199 = sand.u32 %s117, 1
        %s200 = smul.addr %s199, 288
        %s201 = scalar_lea.vmem [#allocation2], %s200
        %p202 = scmp.lt.s32.totalorder %s21, 1
        %s203 = scalar_select %p202, %s21, 1
        %s204 = smul.addr %s203, 43
        %s205 = smul.addr %s204, 4
        %s206 = scalar_lea.vmem %s0, %s205
        %p207 = scmp.lt.s32.totalorder %s22, 0
        %s208 = scalar_select %p207, %s22, 0
        %s209 = smul.addr %s208, 2
        %s210 = scalar_lea.vmem %s1, %s209
        %p211 = scmp.lt.s32.totalorder %s22, 0
        %s212 = scalar_select %p211, %s22, 0
        %s213 = scalar_lea.vmem %s2, %s212
        %v215 = vld [vmem:[%s206] sm:$0xf]
        %v216 = vld [vmem:[%s206 + $0x4] sm:$0xf]
        %v217 = vld [vmem:[%s206 + $0x8] sm:$0xf]
        %v218 = vld [vmem:[%s206 + $0xc] sm:$0xf]
        %v219 = vld [vmem:[%s206 + $0x10] sm:$0xf]
        %v220 = vld [vmem:[%s206 + $0x14] sm:$0xf]
        %v221 = vld [vmem:[%s206 + $0x18] sm:$0xf]
        %v222 = vld [vmem:[%s206 + $0x1c] sm:$0xf]
        %v223 = vld [vmem:[%s206 + $0x20] sm:$0xf]
        %v224 = vld [vmem:[%s206 + $0x24] sm:$0xf]
        %v225 = vld [vmem:[%s206 + $0x28] sm:$0xf]
        %v226 = vld [vmem:[%s206 + $0x2c] sm:$0xf]
        %v227 = vld [vmem:[%s206 + $0x30] sm:$0xf]
        %v228 = vld [vmem:[%s206 + $0x34] sm:$0xf]
        %v229 = vld [vmem:[%s206 + $0x38] sm:$0xf]
        %v230 = vld [vmem:[%s206 + $0x3c] sm:$0xf]
        %v231 = vld [vmem:[%s206 + $0x40] sm:$0xf]
        %v232 = vld [vmem:[%s206 + $0x44] sm:$0xf]
        %v233 = vld [vmem:[%s206 + $0x48] sm:$0xf]
        %v234 = vld [vmem:[%s206 + $0x4c] sm:$0xf]
        %v235 = vld [vmem:[%s206 + $0x50] sm:$0xf]
        %v236 = vld [vmem:[%s206 + $0x54] sm:$0xf]
        %v237 = vld [vmem:[%s206 + $0x58] sm:$0xf]
        %v238 = vld [vmem:[%s206 + $0x5c] sm:$0xf]
        %v239 = vld [vmem:[%s206 + $0x60] sm:$0xf]
        %v240 = vld [vmem:[%s206 + $0x64] sm:$0xf]
        %v241 = vld [vmem:[%s206 + $0x68] sm:$0xf]
        %v242 = vld [vmem:[%s206 + $0x6c] sm:$0xf]
        %v243 = vld [vmem:[%s206 + $0x70] sm:$0xf]
        %v244 = vld [vmem:[%s206 + $0x74] sm:$0xf]
        %v245 = vld [vmem:[%s206 + $0x78] sm:$0xf]
        %v246 = vld [vmem:[%s206 + $0x7c] sm:$0xf]
        %v247 = vld [vmem:[%s206 + $0x80] sm:$0xf]
        %v248 = vld [vmem:[%s206 + $0x84] sm:$0xf]
        %v249 = vld [vmem:[%s206 + $0x88] sm:$0xf]
        %v250 = vld [vmem:[%s206 + $0x8c] sm:$0xf]
        %v251 = vld [vmem:[%s210] sm:$0x3]
        %v252 = vld [vmem:[%s206 + $0x90] sm:$0x1]
        %s253 = scalar_lea.vmem %s210, 2
        %v254 = vld [vmem:[%s253] sm:$0x3]
        %v292 = vunpack.c.l.b16 %v215
        %v293 = vunpack.c.l.b16 %v216
        %v294 = vunpack.c.l.b16 %v217
        %v295 = vunpack.c.l.b16 %v218
        %v296 = vunpack.c.l.b16 %v219
        %v297 = vunpack.c.l.b16 %v220
        %v298 = vunpack.c.l.b16 %v221
        %v299 = vunpack.c.l.b16 %v222
        %v300 = vunpack.c.l.b16 %v223
        %v301 = vunpack.c.l.b16 %v224
        %v302 = vunpack.c.l.b16 %v225
        %v303 = vunpack.c.l.b16 %v226
        %v304 = vunpack.c.l.b16 %v227
        %v305 = vunpack.c.l.b16 %v228
        %v306 = vunpack.c.l.b16 %v229
        %v307 = vunpack.c.l.b16 %v230
        %v308 = vunpack.c.l.b16 %v231
        %v309 = vunpack.c.l.b16 %v232
        %v310 = vunpack.c.l.b16 %v233
        %v311 = vunpack.c.l.b16 %v234
        %v312 = vunpack.c.l.b16 %v235
        %v313 = vunpack.c.l.b16 %v236
        %v314 = vunpack.c.l.b16 %v237
        %v315 = vunpack.c.l.b16 %v238
        %v316 = vunpack.c.l.b16 %v239
        %v317 = vunpack.c.l.b16 %v240
        %v318 = vunpack.c.l.b16 %v241
        %v319 = vunpack.c.l.b16 %v242
        %v320 = vunpack.c.l.b16 %v243
        %v321 = vunpack.c.l.b16 %v244
        %v322 = vunpack.c.l.b16 %v245
        %v323 = vunpack.c.l.b16 %v246
        %v324 = vunpack.c.l.b16 %v247
        %v325 = vunpack.c.l.b16 %v248
        %v326 = vunpack.c.l.b16 %v249
        %v327 = vunpack.c.l.b16 %v250
        %v328 = vunpack.c.l.b16 %v252
        %v329 = vpack.c.b16 %v293, %v292
        %v330 = vpack.c.b16 %v295, %v294
        %v331 = vpack.c.b16 %v297, %v296
        %v332 = vpack.c.b16 %v299, %v298
        %v333 = vpack.c.b16 %v301, %v300
        %v334 = vpack.c.b16 %v303, %v302
        %v335 = vpack.c.b16 %v305, %v304
        %v336 = vpack.c.b16 %v307, %v306
        %v337 = vpack.c.b16 %v309, %v308
        %v338 = vpack.c.b16 %v311, %v310
        %v339 = vpack.c.b16 %v313, %v312
        %v340 = vpack.c.b16 %v315, %v314
        %v341 = vpack.c.b16 %v317, %v316
        %v342 = vpack.c.b16 %v319, %v318
        %v343 = vpack.c.b16 %v321, %v320
        %v344 = vpack.c.b16 %v323, %v322
        %v345 = vpack.c.b16 %v325, %v324
        %v346 = vpack.c.b16 %v327, %v326
        %v347 = vpack.c.b16 %v328, %v328
        %vm348 = vsmask.f32 7424
        %v350 = vshrl.u32 %v329, 16
        %v352 = vshll.u32 %v329, 16
        %v354 = vrot.slane %v352, 1
        %v355 = vor.u32 %v350, %v354
        %v357 = vshll.u32 %v330, 16
        %v359 = vrot.slane %v357, 1
        %v360 = vsel %vm348, %v355, %v359
        %v361 = vshrl.u32 %v330, 16
        %v363 = vor.u32 %v361, %v359
        %v365 = vshll.u32 %v331, 16
        %v367 = vrot.slane %v365, 1
        %v368 = vsel %vm348, %v363, %v367
        %v369 = vshrl.u32 %v331, 16
        %v371 = vor.u32 %v369, %v367
        %v373 = vshll.u32 %v332, 16
        %v375 = vrot.slane %v373, 1
        %v376 = vsel %vm348, %v371, %v375
        %v377 = vshrl.u32 %v332, 16
        %v379 = vor.u32 %v377, %v375
        %v381 = vshll.u32 %v333, 16
        %v383 = vrot.slane %v381, 1
        %v384 = vsel %vm348, %v379, %v383
        %v385 = vshrl.u32 %v333, 16
        %v387 = vor.u32 %v385, %v383
        %v389 = vshll.u32 %v334, 16
        %v391 = vrot.slane %v389, 1
        %v392 = vsel %vm348, %v387, %v391
        %v393 = vshrl.u32 %v334, 16
        %v395 = vor.u32 %v393, %v391
        %v397 = vshll.u32 %v335, 16
        %v399 = vrot.slane %v397, 1
        %v400 = vsel %vm348, %v395, %v399
        %v401 = vshrl.u32 %v335, 16
        %v403 = vor.u32 %v401, %v399
        %v405 = vshll.u32 %v336, 16
        %v407 = vrot.slane %v405, 1
        %v408 = vsel %vm348, %v403, %v407
        %v409 = vshrl.u32 %v336, 16
        %v411 = vor.u32 %v409, %v407
        %v413 = vshll.u32 %v337, 16
        %v415 = vrot.slane %v413, 1
        %v416 = vsel %vm348, %v411, %v415
        %v417 = vshrl.u32 %v337, 16
        %v419 = vor.u32 %v417, %v415
        %v421 = vshll.u32 %v338, 16
        %v423 = vrot.slane %v421, 1
        %v424 = vsel %vm348, %v419, %v423
        %v425 = vshrl.u32 %v338, 16
        %v427 = vor.u32 %v425, %v423
        %v429 = vshll.u32 %v339, 16
        %v431 = vrot.slane %v429, 1
        %v432 = vsel %vm348, %v427, %v431
        %v433 = vshrl.u32 %v339, 16
        %v435 = vor.u32 %v433, %v431
        %v437 = vshll.u32 %v340, 16
        %v439 = vrot.slane %v437, 1
        %v440 = vsel %vm348, %v435, %v439
        %v441 = vshrl.u32 %v340, 16
        %v443 = vor.u32 %v441, %v439
        %v445 = vshll.u32 %v341, 16
        %v447 = vrot.slane %v445, 1
        %v448 = vsel %vm348, %v443, %v447
        %v449 = vshrl.u32 %v341, 16
        %v451 = vor.u32 %v449, %v447
        %v453 = vshll.u32 %v342, 16
        %v455 = vrot.slane %v453, 1
        %v456 = vsel %vm348, %v451, %v455
        %v457 = vshrl.u32 %v342, 16
        %v459 = vor.u32 %v457, %v455
        %v461 = vshll.u32 %v343, 16
        %v463 = vrot.slane %v461, 1
        %v464 = vsel %vm348, %v459, %v463
        %v465 = vshrl.u32 %v343, 16
        %v467 = vor.u32 %v465, %v463
        %v469 = vshll.u32 %v344, 16
        %v471 = vrot.slane %v469, 1
        %v472 = vsel %vm348, %v467, %v471
        %v473 = vshrl.u32 %v344, 16
        %v475 = vor.u32 %v473, %v471
        %v477 = vshll.u32 %v345, 16
        %v479 = vrot.slane %v477, 1
        %v480 = vsel %vm348, %v475, %v479
        %v481 = vshrl.u32 %v345, 16
        %v483 = vor.u32 %v481, %v479
        %v485 = vshll.u32 %v346, 16
        %v487 = vrot.slane %v485, 1
        %v488 = vsel %vm348, %v483, %v487
        %v489 = vshrl.u32 %v346, 16
        %v491 = vor.u32 %v489, %v487
        %v493 = vshll.u32 %v347, 16
        %v495 = vrot.slane %v493, 1
        %v496 = vsel %vm348, %v491, %v495
        %vm497 = vcmask 31744
        %v499 = vsel %vm497, %v360, 0
        %v502 = vsel %vm497, %v368, 0
        %v505 = vsel %vm497, %v376, 0
        %v508 = vsel %vm497, %v384, 0
        %v511 = vsel %vm497, %v392, 0
        %v514 = vsel %vm497, %v400, 0
        %v517 = vsel %vm497, %v408, 0
        %v520 = vsel %vm497, %v416, 0
        %v523 = vsel %vm497, %v424, 0
        %v526 = vsel %vm497, %v432, 0
        %v529 = vsel %vm497, %v440, 0
        %v532 = vsel %vm497, %v448, 0
        %v535 = vsel %vm497, %v456, 0
        %v538 = vsel %vm497, %v464, 0
        %v541 = vsel %vm497, %v472, 0
        %v544 = vsel %vm497, %v480, 0
        %v547 = vsel %vm497, %v488, 0
        %v550 = vsel %vm497, %v496, 0
        %vm552 = vcmask 1041408
        %v554 = vsel %vm552, %v254, 0
        %556 = vmatpush.bf16.msra.mxu0 0
        %557 = vmatpush.bf16.msra.mxu0 0
        %558 = vmatpush.bf16.msra.mxu0 0
        %559 = vmatpush.bf16.msra.mxu0 0
        %560 = vmatpush.bf16.msra.mxu0 0
        %561 = vmatpush.bf16.msra.mxu0 0
        %562 = vmatpush.bf16.msra.mxu0 0
        %563 = vmatpush.bf16.msra.mxu0 %v554
        %564 = vmatmul.bf16.gmra.mxu0 %v499
        %v565 = vpop.f32.mrf.mxu0
        %v566 = vadd.f32 0.0, %v565
        %v567 = vpop.f32.mrf.mxu0
        %v568 = vadd.f32 0.0, %v567
        %569 = vmatmul.bf16.gmra.mxu0 %v502
        %v570 = vpop.f32.mrf.mxu0
        %v571 = vadd.f32 0.0, %v570
        %v572 = vpop.f32.mrf.mxu0
        %v573 = vadd.f32 0.0, %v572
        %574 = vmatmul.bf16.gmra.mxu0 %v505
        %v575 = vpop.f32.mrf.mxu0
        %v576 = vadd.f32 0.0, %v575
        %v577 = vpop.f32.mrf.mxu0
        %v578 = vadd.f32 0.0, %v577
        %579 = vmatmul.bf16.gmra.mxu0 %v508
        %v580 = vpop.f32.mrf.mxu0
        %v581 = vadd.f32 0.0, %v580
        %v582 = vpop.f32.mrf.mxu0
        %v583 = vadd.f32 0.0, %v582
        %584 = vmatmul.bf16.gmra.mxu0 %v511
        %v585 = vpop.f32.mrf.mxu0
        %v586 = vadd.f32 0.0, %v585
        %v587 = vpop.f32.mrf.mxu0
        %v588 = vadd.f32 0.0, %v587
        %589 = vmatmul.bf16.gmra.mxu0 %v514
        %v590 = vpop.f32.mrf.mxu0
        %v591 = vadd.f32 0.0, %v590
        %v592 = vpop.f32.mrf.mxu0
        %v593 = vadd.f32 0.0, %v592
        %594 = vmatmul.bf16.gmra.mxu0 %v517
        %v595 = vpop.f32.mrf.mxu0
        %v596 = vadd.f32 0.0, %v595
        %v597 = vpop.f32.mrf.mxu0
        %v598 = vadd.f32 0.0, %v597
        %599 = vmatmul.bf16.gmra.mxu0 %v520
        %v600 = vpop.f32.mrf.mxu0
        %v601 = vadd.f32 0.0, %v600
        %v602 = vpop.f32.mrf.mxu0
        %v603 = vadd.f32 0.0, %v602
        %604 = vmatmul.bf16.gmra.mxu0 %v523
        %v605 = vpop.f32.mrf.mxu0
        %v606 = vadd.f32 0.0, %v605
        %v607 = vpop.f32.mrf.mxu0
        %v608 = vadd.f32 0.0, %v607
        %609 = vmatmul.bf16.gmra.mxu0 %v526
        %v610 = vpop.f32.mrf.mxu0
        %v611 = vadd.f32 0.0, %v610
        %v612 = vpop.f32.mrf.mxu0
        %v613 = vadd.f32 0.0, %v612
        %614 = vmatmul.bf16.gmra.mxu0 %v529
        %v615 = vpop.f32.mrf.mxu0
        %v616 = vadd.f32 0.0, %v615
        %v617 = vpop.f32.mrf.mxu0
        %v618 = vadd.f32 0.0, %v617
        %619 = vmatmul.bf16.gmra.mxu0 %v532
        %v620 = vpop.f32.mrf.mxu0
        %v621 = vadd.f32 0.0, %v620
        %v622 = vpop.f32.mrf.mxu0
        %v623 = vadd.f32 0.0, %v622
        %624 = vmatmul.bf16.gmra.mxu0 %v535
        %v625 = vpop.f32.mrf.mxu0
        %v626 = vadd.f32 0.0, %v625
        %v627 = vpop.f32.mrf.mxu0
        %v628 = vadd.f32 0.0, %v627
        %629 = vmatmul.bf16.gmra.mxu0 %v538
        %v630 = vpop.f32.mrf.mxu0
        %v631 = vadd.f32 0.0, %v630
        %v632 = vpop.f32.mrf.mxu0
        %v633 = vadd.f32 0.0, %v632
        %634 = vmatmul.bf16.gmra.mxu0 %v541
        %v635 = vpop.f32.mrf.mxu0
        %v636 = vadd.f32 0.0, %v635
        %v637 = vpop.f32.mrf.mxu0
        %v638 = vadd.f32 0.0, %v637
        %639 = vmatmul.bf16.gmra.mxu0 %v544
        %v640 = vpop.f32.mrf.mxu0
        %v641 = vadd.f32 0.0, %v640
        %v642 = vpop.f32.mrf.mxu0
        %v643 = vadd.f32 0.0, %v642
        %644 = vmatmul.bf16.gmra.mxu0 %v547
        %v645 = vpop.f32.mrf.mxu0
        %v646 = vadd.f32 0.0, %v645
        %v647 = vpop.f32.mrf.mxu0
        %v648 = vadd.f32 0.0, %v647
        %649 = vmatmul.bf16.gmra.mxu0 %v550
        %v650 = vpop.f32.mrf.mxu0
        %v651 = vadd.f32 0.0, %v650
        %v652 = vpop.f32.mrf.mxu0
        %v653 = vadd.f32 0.0, %v652
        %654 = vdwg.mxu0
        %v655 = vsel %vm497, %v329, 0
        %v657 = vsel %vm497, %v330, 0
        %v659 = vsel %vm497, %v331, 0
        %v661 = vsel %vm497, %v332, 0
        %v663 = vsel %vm497, %v333, 0
        %v665 = vsel %vm497, %v334, 0
        %v667 = vsel %vm497, %v335, 0
        %v669 = vsel %vm497, %v336, 0
        %v671 = vsel %vm497, %v337, 0
        %v673 = vsel %vm497, %v338, 0
        %v675 = vsel %vm497, %v339, 0
        %v677 = vsel %vm497, %v340, 0
        %v679 = vsel %vm497, %v341, 0
        %v681 = vsel %vm497, %v342, 0
        %v683 = vsel %vm497, %v343, 0
        %v685 = vsel %vm497, %v344, 0
        %v687 = vsel %vm497, %v345, 0
        %v689 = vsel %vm497, %v346, 0
        %v692 = vsel %vm552, %v251, 0
        %694 = vmatpush.bf16.msra.mxu0 0
        %695 = vmatpush.bf16.msra.mxu0 0
        %696 = vmatpush.bf16.msra.mxu0 0
        %697 = vmatpush.bf16.msra.mxu0 0
        %698 = vmatpush.bf16.msra.mxu0 0
        %699 = vmatpush.bf16.msra.mxu0 0
        %700 = vmatpush.bf16.msra.mxu0 0
        %701 = vmatpush.bf16.msra.mxu0 %v692
        %702 = vmatmul.bf16.gmra.mxu0 %v655
        %v703 = vpop.f32.mrf.mxu0
        %v704 = vadd.f32 %v566, %v703
        %v705 = vpop.f32.mrf.mxu0
        %v706 = vadd.f32 %v568, %v705
        %707 = vmatmul.bf16.gmra.mxu0 %v657
        %v708 = vpop.f32.mrf.mxu0
        %v709 = vadd.f32 %v571, %v708
        %v710 = vpop.f32.mrf.mxu0
        %v711 = vadd.f32 %v573, %v710
        %712 = vmatmul.bf16.gmra.mxu0 %v659
        %v713 = vpop.f32.mrf.mxu0
        %v714 = vadd.f32 %v576, %v713
        %v715 = vpop.f32.mrf.mxu0
        %v716 = vadd.f32 %v578, %v715
        %717 = vmatmul.bf16.gmra.mxu0 %v661
        %v718 = vpop.f32.mrf.mxu0
        %v719 = vadd.f32 %v581, %v718
        %v720 = vpop.f32.mrf.mxu0
        %v721 = vadd.f32 %v583, %v720
        %722 = vmatmul.bf16.gmra.mxu0 %v663
        %v723 = vpop.f32.mrf.mxu0
        %v724 = vadd.f32 %v586, %v723
        %v725 = vpop.f32.mrf.mxu0
        %v726 = vadd.f32 %v588, %v725
        %727 = vmatmul.bf16.gmra.mxu0 %v665
        %v728 = vpop.f32.mrf.mxu0
        %v729 = vadd.f32 %v591, %v728
        %v730 = vpop.f32.mrf.mxu0
        %v731 = vadd.f32 %v593, %v730
        %732 = vmatmul.bf16.gmra.mxu0 %v667
        %v733 = vpop.f32.mrf.mxu0
        %v734 = vadd.f32 %v596, %v733
        %v735 = vpop.f32.mrf.mxu0
        %v736 = vadd.f32 %v598, %v735
        %737 = vmatmul.bf16.gmra.mxu0 %v669
        %v738 = vpop.f32.mrf.mxu0
        %v739 = vadd.f32 %v601, %v738
        %v740 = vpop.f32.mrf.mxu0
        %v741 = vadd.f32 %v603, %v740
        %742 = vmatmul.bf16.gmra.mxu0 %v671
        %v743 = vpop.f32.mrf.mxu0
        %v744 = vadd.f32 %v606, %v743
        %v745 = vpop.f32.mrf.mxu0
        %v746 = vadd.f32 %v608, %v745
        %747 = vmatmul.bf16.gmra.mxu0 %v673
        %v748 = vpop.f32.mrf.mxu0
        %v749 = vadd.f32 %v611, %v748
        %v750 = vpop.f32.mrf.mxu0
        %v751 = vadd.f32 %v613, %v750
        %752 = vmatmul.bf16.gmra.mxu0 %v675
        %v753 = vpop.f32.mrf.mxu0
        %v754 = vadd.f32 %v616, %v753
        %v755 = vpop.f32.mrf.mxu0
        %v756 = vadd.f32 %v618, %v755
        %757 = vmatmul.bf16.gmra.mxu0 %v677
        %v758 = vpop.f32.mrf.mxu0
        %v759 = vadd.f32 %v621, %v758
        %v760 = vpop.f32.mrf.mxu0
        %v761 = vadd.f32 %v623, %v760
        %762 = vmatmul.bf16.gmra.mxu0 %v679
        %v763 = vpop.f32.mrf.mxu0
        %v764 = vadd.f32 %v626, %v763
        %v765 = vpop.f32.mrf.mxu0
        %v766 = vadd.f32 %v628, %v765
        %767 = vmatmul.bf16.gmra.mxu0 %v681
        %v768 = vpop.f32.mrf.mxu0
        %v769 = vadd.f32 %v631, %v768
        %v770 = vpop.f32.mrf.mxu0
        %v771 = vadd.f32 %v633, %v770
        %772 = vmatmul.bf16.gmra.mxu0 %v683
        %v773 = vpop.f32.mrf.mxu0
        %v774 = vadd.f32 %v636, %v773
        %v775 = vpop.f32.mrf.mxu0
        %v776 = vadd.f32 %v638, %v775
        %777 = vmatmul.bf16.gmra.mxu0 %v685
        %v778 = vpop.f32.mrf.mxu0
        %v779 = vadd.f32 %v641, %v778
        %v780 = vpop.f32.mrf.mxu0
        %v781 = vadd.f32 %v643, %v780
        %782 = vmatmul.bf16.gmra.mxu0 %v687
        %v783 = vpop.f32.mrf.mxu0
        %v784 = vadd.f32 %v646, %v783
        %v785 = vpop.f32.mrf.mxu0
        %v786 = vadd.f32 %v648, %v785
        %787 = vmatmul.bf16.gmra.mxu0 %v689
        %v788 = vpop.f32.mrf.mxu0
        %v789 = vadd.f32 %v651, %v788
        %v790 = vpop.f32.mrf.mxu0
        %v791 = vadd.f32 %v653, %v790
        %792 = vdwg.mxu0
        %v793 = vld [vmem:[%s206] sm:$0xe]
        %s794 = scalar_lea.vmem %s210, 4
        %v795 = vld [vmem:[%s794] sm:$0x3]
        %v797 = vunpack.c.l.b16 %v793
        %v798 = vpack.c.b16 %v293, %v797
        %vm799 = vcmask 1046528
        %v800 = vrot.slane %v798, 1
        %v801 = vrot.slane %v330, 1
        %v802 = vsel %vm799, %v800, %v801
        %v803 = vrot.slane %v331, 1
        %v804 = vsel %vm799, %v801, %v803
        %v805 = vrot.slane %v332, 1
        %v806 = vsel %vm799, %v803, %v805
        %v807 = vrot.slane %v333, 1
        %v808 = vsel %vm799, %v805, %v807
        %v809 = vrot.slane %v334, 1
        %v810 = vsel %vm799, %v807, %v809
        %v811 = vrot.slane %v335, 1
        %v812 = vsel %vm799, %v809, %v811
        %v813 = vrot.slane %v336, 1
        %v814 = vsel %vm799, %v811, %v813
        %v815 = vrot.slane %v337, 1
        %v816 = vsel %vm799, %v813, %v815
        %v817 = vrot.slane %v338, 1
        %v818 = vsel %vm799, %v815, %v817
        %v819 = vrot.slane %v339, 1
        %v820 = vsel %vm799, %v817, %v819
        %v821 = vrot.slane %v340, 1
        %v822 = vsel %vm799, %v819, %v821
        %v823 = vrot.slane %v341, 1
        %v824 = vsel %vm799, %v821, %v823
        %v825 = vrot.slane %v342, 1
        %v826 = vsel %vm799, %v823, %v825
        %v827 = vrot.slane %v343, 1
        %v828 = vsel %vm799, %v825, %v827
        %v829 = vrot.slane %v344, 1
        %v830 = vsel %vm799, %v827, %v829
        %v831 = vrot.slane %v345, 1
        %v832 = vsel %vm799, %v829, %v831
        %v833 = vrot.slane %v346, 1
        %v834 = vsel %vm799, %v831, %v833
        %v835 = vrot.slane %v347, 1
        %v836 = vsel %vm799, %v833, %v835
        %v838 = vsel %vm497, %v802, 0
        %v841 = vsel %vm497, %v804, 0
        %v844 = vsel %vm497, %v806, 0
        %v847 = vsel %vm497, %v808, 0
        %v850 = vsel %vm497, %v810, 0
        %v853 = vsel %vm497, %v812, 0
        %v856 = vsel %vm497, %v814, 0
        %v859 = vsel %vm497, %v816, 0
        %v862 = vsel %vm497, %v818, 0
        %v865 = vsel %vm497, %v820, 0
        %v868 = vsel %vm497, %v822, 0
        %v871 = vsel %vm497, %v824, 0
        %v874 = vsel %vm497, %v826, 0
        %v877 = vsel %vm497, %v828, 0
        %v880 = vsel %vm497, %v830, 0
        %v883 = vsel %vm497, %v832, 0
        %v886 = vsel %vm497, %v834, 0
        %v889 = vsel %vm497, %v836, 0
        %v892 = vsel %vm552, %v795, 0
        %894 = vmatpush.bf16.msra.mxu0 0
        %895 = vmatpush.bf16.msra.mxu0 0
        %896 = vmatpush.bf16.msra.mxu0 0
        %897 = vmatpush.bf16.msra.mxu0 0
        %898 = vmatpush.bf16.msra.mxu0 0
        %899 = vmatpush.bf16.msra.mxu0 0
        %900 = vmatpush.bf16.msra.mxu0 0
        %901 = vmatpush.bf16.msra.mxu0 %v892
        %902 = vmatmul.bf16.gmra.mxu0 %v838
        %v903 = vpop.f32.mrf.mxu0
        %v904 = vadd.f32 0.0, %v903
        %v905 = vpop.f32.mrf.mxu0
        %v906 = vadd.f32 0.0, %v905
        %907 = vmatmul.bf16.gmra.mxu0 %v841
        %v908 = vpop.f32.mrf.mxu0
        %v909 = vadd.f32 0.0, %v908
        %v910 = vpop.f32.mrf.mxu0
        %v911 = vadd.f32 0.0, %v910
        %912 = vmatmul.bf16.gmra.mxu0 %v844
        %v913 = vpop.f32.mrf.mxu0
        %v914 = vadd.f32 0.0, %v913
        %v915 = vpop.f32.mrf.mxu0
        %v916 = vadd.f32 0.0, %v915
        %917 = vmatmul.bf16.gmra.mxu0 %v847
        %v918 = vpop.f32.mrf.mxu0
        %v919 = vadd.f32 0.0, %v918
        %v920 = vpop.f32.mrf.mxu0
        %v921 = vadd.f32 0.0, %v920
        %922 = vmatmul.bf16.gmra.mxu0 %v850
        %v923 = vpop.f32.mrf.mxu0
        %v924 = vadd.f32 0.0, %v923
        %v925 = vpop.f32.mrf.mxu0
        %v926 = vadd.f32 0.0, %v925
        %927 = vmatmul.bf16.gmra.mxu0 %v853
        %v928 = vpop.f32.mrf.mxu0
        %v929 = vadd.f32 0.0, %v928
        %v930 = vpop.f32.mrf.mxu0
        %v931 = vadd.f32 0.0, %v930
        %932 = vmatmul.bf16.gmra.mxu0 %v856
        %v933 = vpop.f32.mrf.mxu0
        %v934 = vadd.f32 0.0, %v933
        %v935 = vpop.f32.mrf.mxu0
        %v936 = vadd.f32 0.0, %v935
        %937 = vmatmul.bf16.gmra.mxu0 %v859
        %v938 = vpop.f32.mrf.mxu0
        %v939 = vadd.f32 0.0, %v938
        %v940 = vpop.f32.mrf.mxu0
        %v941 = vadd.f32 0.0, %v940
        %942 = vmatmul.bf16.gmra.mxu0 %v862
        %v943 = vpop.f32.mrf.mxu0
        %v944 = vadd.f32 0.0, %v943
        %v945 = vpop.f32.mrf.mxu0
        %v946 = vadd.f32 0.0, %v945
        %947 = vmatmul.bf16.gmra.mxu0 %v865
        %v948 = vpop.f32.mrf.mxu0
        %v949 = vadd.f32 0.0, %v948
        %v950 = vpop.f32.mrf.mxu0
        %v951 = vadd.f32 0.0, %v950
        %952 = vmatmul.bf16.gmra.mxu0 %v868
        %v953 = vpop.f32.mrf.mxu0
        %v954 = vadd.f32 0.0, %v953
        %v955 = vpop.f32.mrf.mxu0
        %v956 = vadd.f32 0.0, %v955
        %957 = vmatmul.bf16.gmra.mxu0 %v871
        %v958 = vpop.f32.mrf.mxu0
        %v959 = vadd.f32 0.0, %v958
        %v960 = vpop.f32.mrf.mxu0
        %v961 = vadd.f32 0.0, %v960
        %962 = vmatmul.bf16.gmra.mxu0 %v874
        %v963 = vpop.f32.mrf.mxu0
        %v964 = vadd.f32 0.0, %v963
        %v965 = vpop.f32.mrf.mxu0
        %v966 = vadd.f32 0.0, %v965
        %967 = vmatmul.bf16.gmra.mxu0 %v877
        %v968 = vpop.f32.mrf.mxu0
        %v969 = vadd.f32 0.0, %v968
        %v970 = vpop.f32.mrf.mxu0
        %v971 = vadd.f32 0.0, %v970
        %972 = vmatmul.bf16.gmra.mxu0 %v880
        %v973 = vpop.f32.mrf.mxu0
        %v974 = vadd.f32 0.0, %v973
        %v975 = vpop.f32.mrf.mxu0
        %v976 = vadd.f32 0.0, %v975
        %977 = vmatmul.bf16.gmra.mxu0 %v883
        %v978 = vpop.f32.mrf.mxu0
        %v979 = vadd.f32 0.0, %v978
        %v980 = vpop.f32.mrf.mxu0
        %v981 = vadd.f32 0.0, %v980
        %982 = vmatmul.bf16.gmra.mxu0 %v886
        %v983 = vpop.f32.mrf.mxu0
        %v984 = vadd.f32 0.0, %v983
        %v985 = vpop.f32.mrf.mxu0
        %v986 = vadd.f32 0.0, %v985
        %987 = vmatmul.bf16.gmra.mxu0 %v889
        %v988 = vpop.f32.mrf.mxu0
        %v989 = vadd.f32 0.0, %v988
        %v990 = vpop.f32.mrf.mxu0
        %v991 = vadd.f32 0.0, %v990
        %992 = vdwg.mxu0
        %v993 = vadd.f32 %v704, %v904
        %v994 = vadd.f32 %v706, %v906
        %v995 = vadd.f32 %v709, %v909
        %v996 = vadd.f32 %v711, %v911
        %v997 = vadd.f32 %v714, %v914
        %v998 = vadd.f32 %v716, %v916
        %v999 = vadd.f32 %v719, %v919
        %v1000 = vadd.f32 %v721, %v921
        %v1001 = vadd.f32 %v724, %v924
        %v1002 = vadd.f32 %v726, %v926
        %v1003 = vadd.f32 %v729, %v929
        %v1004 = vadd.f32 %v731, %v931
        %v1005 = vadd.f32 %v734, %v934
        %v1006 = vadd.f32 %v736, %v936
        %v1007 = vadd.f32 %v739, %v939
        %v1008 = vadd.f32 %v741, %v941
        %v1009 = vadd.f32 %v744, %v944
        %v1010 = vadd.f32 %v746, %v946
        %v1011 = vadd.f32 %v749, %v949
        %v1012 = vadd.f32 %v751, %v951
        %v1013 = vadd.f32 %v754, %v954
        %v1014 = vadd.f32 %v756, %v956
        %v1015 = vadd.f32 %v759, %v959
        %v1016 = vadd.f32 %v761, %v961
        %v1017 = vadd.f32 %v764, %v964
        %v1018 = vadd.f32 %v766, %v966
        %v1019 = vadd.f32 %v769, %v969
        %v1020 = vadd.f32 %v771, %v971
        %v1021 = vadd.f32 %v774, %v974
        %v1022 = vadd.f32 %v776, %v976
        %v1023 = vadd.f32 %v779, %v979
        %v1024 = vadd.f32 %v781, %v981
        %v1025 = vadd.f32 %v784, %v984
        %v1026 = vadd.f32 %v786, %v986
        %v1027 = vadd.f32 %v789, %v989
        %v1028 = vadd.f32 %v791, %v991
        %v1029 = vld [vmem:[%s206 + $0x8] sm:$0xe]
        %v1030 = vld [vmem:[%s206 + $0xc] sm:$0xf]
        %v1031 = vld [vmem:[%s206 + $0x10] sm:$0xf]
        %v1032 = vld [vmem:[%s206 + $0x14] sm:$0xf]
        %v1033 = vld [vmem:[%s206 + $0x18] sm:$0xf]
        %v1034 = vld [vmem:[%s206 + $0x1c] sm:$0xf]
        %v1035 = vld [vmem:[%s206 + $0x20] sm:$0xf]
        %v1036 = vld [vmem:[%s206 + $0x24] sm:$0xf]
        %v1037 = vld [vmem:[%s206 + $0x28] sm:$0xf]
        %v1038 = vld [vmem:[%s206 + $0x2c] sm:$0xf]
        %v1039 = vld [vmem:[%s206 + $0x30] sm:$0xf]
        %v1040 = vld [vmem:[%s206 + $0x34] sm:$0xf]
        %v1041 = vld [vmem:[%s206 + $0x38] sm:$0xf]
        %v1042 = vld [vmem:[%s206 + $0x3c] sm:$0xf]
        %v1043 = vld [vmem:[%s206 + $0x40] sm:$0xf]
        %v1044 = vld [vmem:[%s206 + $0x44] sm:$0xf]
        %v1045 = vld [vmem:[%s206 + $0x48] sm:$0xf]
        %v1046 = vld [vmem:[%s206 + $0x4c] sm:$0xf]
        %v1047 = vld [vmem:[%s206 + $0x50] sm:$0xf]
        %v1048 = vld [vmem:[%s206 + $0x54] sm:$0xf]
        %v1049 = vld [vmem:[%s206 + $0x58] sm:$0xf]
        %v1050 = vld [vmem:[%s206 + $0x5c] sm:$0xf]
        %v1051 = vld [vmem:[%s206 + $0x60] sm:$0xf]
        %v1052 = vld [vmem:[%s206 + $0x64] sm:$0xf]
        %v1053 = vld [vmem:[%s206 + $0x68] sm:$0xf]
        %v1054 = vld [vmem:[%s206 + $0x6c] sm:$0xf]
        %v1055 = vld [vmem:[%s206 + $0x70] sm:$0xf]
        %v1056 = vld [vmem:[%s206 + $0x74] sm:$0xf]
        %v1057 = vld [vmem:[%s206 + $0x78] sm:$0xf]
        %v1058 = vld [vmem:[%s206 + $0x7c] sm:$0xf]
        %v1059 = vld [vmem:[%s206 + $0x80] sm:$0xf]
        %v1060 = vld [vmem:[%s206 + $0x84] sm:$0xf]
        %v1061 = vld [vmem:[%s206 + $0x88] sm:$0xf]
        %v1062 = vld [vmem:[%s206 + $0x8c] sm:$0xf]
        %v1063 = vld [vmem:[%s206 + $0x90] sm:$0xf]
        %v1064 = vld [vmem:[%s206 + $0x94] sm:$0xf]
        %v1065 = vld [vmem:[%s206 + $0x98] sm:$0x1]
        %s1066 = scalar_lea.vmem %s210, 6
        %v1067 = vld [vmem:[%s1066] sm:$0x3]
        %v1105 = vunpack.c.l.b16 %v1029
        %v1106 = vunpack.c.l.b16 %v1030
        %v1107 = vunpack.c.l.b16 %v1031
        %v1108 = vunpack.c.l.b16 %v1032
        %v1109 = vunpack.c.l.b16 %v1033
        %v1110 = vunpack.c.l.b16 %v1034
        %v1111 = vunpack.c.l.b16 %v1035
        %v1112 = vunpack.c.l.b16 %v1036
        %v1113 = vunpack.c.l.b16 %v1037
        %v1114 = vunpack.c.l.b16 %v1038
        %v1115 = vunpack.c.l.b16 %v1039
        %v1116 = vunpack.c.l.b16 %v1040
        %v1117 = vunpack.c.l.b16 %v1041
        %v1118 = vunpack.c.l.b16 %v1042
        %v1119 = vunpack.c.l.b16 %v1043
        %v1120 = vunpack.c.l.b16 %v1044
        %v1121 = vunpack.c.l.b16 %v1045
        %v1122 = vunpack.c.l.b16 %v1046
        %v1123 = vunpack.c.l.b16 %v1047
        %v1124 = vunpack.c.l.b16 %v1048
        %v1125 = vunpack.c.l.b16 %v1049
        %v1126 = vunpack.c.l.b16 %v1050
        %v1127 = vunpack.c.l.b16 %v1051
        %v1128 = vunpack.c.l.b16 %v1052
        %v1129 = vunpack.c.l.b16 %v1053
        %v1130 = vunpack.c.l.b16 %v1054
        %v1131 = vunpack.c.l.b16 %v1055
        %v1132 = vunpack.c.l.b16 %v1056
        %v1133 = vunpack.c.l.b16 %v1057
        %v1134 = vunpack.c.l.b16 %v1058
        %v1135 = vunpack.c.l.b16 %v1059
        %v1136 = vunpack.c.l.b16 %v1060
        %v1137 = vunpack.c.l.b16 %v1061
        %v1138 = vunpack.c.l.b16 %v1062
        %v1139 = vunpack.c.l.b16 %v1063
        %v1140 = vunpack.c.l.b16 %v1064
        %v1141 = vunpack.c.l.b16 %v1065
        %v1142 = vpack.c.b16 %v1106, %v1105
        %v1143 = vpack.c.b16 %v1108, %v1107
        %v1144 = vpack.c.b16 %v1110, %v1109
        %v1145 = vpack.c.b16 %v1112, %v1111
        %v1146 = vpack.c.b16 %v1114, %v1113
        %v1147 = vpack.c.b16 %v1116, %v1115
        %v1148 = vpack.c.b16 %v1118, %v1117
        %v1149 = vpack.c.b16 %v1120, %v1119
        %v1150 = vpack.c.b16 %v1122, %v1121
        %v1151 = vpack.c.b16 %v1124, %v1123
        %v1152 = vpack.c.b16 %v1126, %v1125
        %v1153 = vpack.c.b16 %v1128, %v1127
        %v1154 = vpack.c.b16 %v1130, %v1129
        %v1155 = vpack.c.b16 %v1132, %v1131
        %v1156 = vpack.c.b16 %v1134, %v1133
        %v1157 = vpack.c.b16 %v1136, %v1135
        %v1158 = vpack.c.b16 %v1138, %v1137
        %v1159 = vpack.c.b16 %v1140, %v1139
        %v1160 = vpack.c.b16 %v1141, %v1141
        %v1161 = vrot.slane %v1142, 1
        %v1162 = vrot.slane %v1143, 1
        %v1163 = vsel %vm799, %v1161, %v1162
        %v1164 = vrot.slane %v1144, 1
        %v1165 = vsel %vm799, %v1162, %v1164
        %v1166 = vrot.slane %v1145, 1
        %v1167 = vsel %vm799, %v1164, %v1166
        %v1168 = vrot.slane %v1146, 1
        %v1169 = vsel %vm799, %v1166, %v1168
        %v1170 = vrot.slane %v1147, 1
        %v1171 = vsel %vm799, %v1168, %v1170
        %v1172 = vrot.slane %v1148, 1
        %v1173 = vsel %vm799, %v1170, %v1172
        %v1174 = vrot.slane %v1149, 1
        %v1175 = vsel %vm799, %v1172, %v1174
        %v1176 = vrot.slane %v1150, 1
        %v1177 = vsel %vm799, %v1174, %v1176
        %v1178 = vrot.slane %v1151, 1
        %v1179 = vsel %vm799, %v1176, %v1178
        %v1180 = vrot.slane %v1152, 1
        %v1181 = vsel %vm799, %v1178, %v1180
        %v1182 = vrot.slane %v1153, 1
        %v1183 = vsel %vm799, %v1180, %v1182
        %v1184 = vrot.slane %v1154, 1
        %v1185 = vsel %vm799, %v1182, %v1184
        %v1186 = vrot.slane %v1155, 1
        %v1187 = vsel %vm799, %v1184, %v1186
        %v1188 = vrot.slane %v1156, 1
        %v1189 = vsel %vm799, %v1186, %v1188
        %v1190 = vrot.slane %v1157, 1
        %v1191 = vsel %vm799, %v1188, %v1190
        %v1192 = vrot.slane %v1158, 1
        %v1193 = vsel %vm799, %v1190, %v1192
        %v1194 = vrot.slane %v1159, 1
        %v1195 = vsel %vm799, %v1192, %v1194
        %v1196 = vrot.slane %v1160, 1
        %v1197 = vsel %vm799, %v1194, %v1196
        %v1199 = vsel %vm497, %v1163, 0
        %v1202 = vsel %vm497, %v1165, 0
        %v1205 = vsel %vm497, %v1167, 0
        %v1208 = vsel %vm497, %v1169, 0
        %v1211 = vsel %vm497, %v1171, 0
        %v1214 = vsel %vm497, %v1173, 0
        %v1217 = vsel %vm497, %v1175, 0
        %v1220 = vsel %vm497, %v1177, 0
        %v1223 = vsel %vm497, %v1179, 0
        %v1226 = vsel %vm497, %v1181, 0
        %v1229 = vsel %vm497, %v1183, 0
        %v1232 = vsel %vm497, %v1185, 0
        %v1235 = vsel %vm497, %v1187, 0
        %v1238 = vsel %vm497, %v1189, 0
        %v1241 = vsel %vm497, %v1191, 0
        %v1244 = vsel %vm497, %v1193, 0
        %v1247 = vsel %vm497, %v1195, 0
        %v1250 = vsel %vm497, %v1197, 0
        %v1253 = vsel %vm552, %v1067, 0
        %1255 = vmatpush.bf16.msra.mxu0 0
        %1256 = vmatpush.bf16.msra.mxu0 0
        %1257 = vmatpush.bf16.msra.mxu0 0
        %1258 = vmatpush.bf16.msra.mxu0 0
        %1259 = vmatpush.bf16.msra.mxu0 0
        %1260 = vmatpush.bf16.msra.mxu0 0
        %1261 = vmatpush.bf16.msra.mxu0 0
        %1262 = vmatpush.bf16.msra.mxu0 %v1253
        %1263 = vmatmul.bf16.gmra.mxu0 %v1199
        %v1264 = vpop.f32.mrf.mxu0
        %v1265 = vadd.f32 0.0, %v1264
        %v1266 = vpop.f32.mrf.mxu0
        %v1267 = vadd.f32 0.0, %v1266
        %1268 = vmatmul.bf16.gmra.mxu0 %v1202
        %v1269 = vpop.f32.mrf.mxu0
        %v1270 = vadd.f32 0.0, %v1269
        %v1271 = vpop.f32.mrf.mxu0
        %v1272 = vadd.f32 0.0, %v1271
        %1273 = vmatmul.bf16.gmra.mxu0 %v1205
        %v1274 = vpop.f32.mrf.mxu0
        %v1275 = vadd.f32 0.0, %v1274
        %v1276 = vpop.f32.mrf.mxu0
        %v1277 = vadd.f32 0.0, %v1276
        %1278 = vmatmul.bf16.gmra.mxu0 %v1208
        %v1279 = vpop.f32.mrf.mxu0
        %v1280 = vadd.f32 0.0, %v1279
        %v1281 = vpop.f32.mrf.mxu0
        %v1282 = vadd.f32 0.0, %v1281
        %1283 = vmatmul.bf16.gmra.mxu0 %v1211
        %v1284 = vpop.f32.mrf.mxu0
        %v1285 = vadd.f32 0.0, %v1284
        %v1286 = vpop.f32.mrf.mxu0
        %v1287 = vadd.f32 0.0, %v1286
        %1288 = vmatmul.bf16.gmra.mxu0 %v1214
        %v1289 = vpop.f32.mrf.mxu0
        %v1290 = vadd.f32 0.0, %v1289
        %v1291 = vpop.f32.mrf.mxu0
        %v1292 = vadd.f32 0.0, %v1291
        %1293 = vmatmul.bf16.gmra.mxu0 %v1217
        %v1294 = vpop.f32.mrf.mxu0
        %v1295 = vadd.f32 0.0, %v1294
        %v1296 = vpop.f32.mrf.mxu0
        %v1297 = vadd.f32 0.0, %v1296
        %1298 = vmatmul.bf16.gmra.mxu0 %v1220
        %v1299 = vpop.f32.mrf.mxu0
        %v1300 = vadd.f32 0.0, %v1299
        %v1301 = vpop.f32.mrf.mxu0
        %v1302 = vadd.f32 0.0, %v1301
        %1303 = vmatmul.bf16.gmra.mxu0 %v1223
        %v1304 = vpop.f32.mrf.mxu0
        %v1305 = vadd.f32 0.0, %v1304
        %v1306 = vpop.f32.mrf.mxu0
        %v1307 = vadd.f32 0.0, %v1306
        %1308 = vmatmul.bf16.gmra.mxu0 %v1226
        %v1309 = vpop.f32.mrf.mxu0
        %v1310 = vadd.f32 0.0, %v1309
        %v1311 = vpop.f32.mrf.mxu0
        %v1312 = vadd.f32 0.0, %v1311
        %1313 = vmatmul.bf16.gmra.mxu0 %v1229
        %v1314 = vpop.f32.mrf.mxu0
        %v1315 = vadd.f32 0.0, %v1314
        %v1316 = vpop.f32.mrf.mxu0
        %v1317 = vadd.f32 0.0, %v1316
        %1318 = vmatmul.bf16.gmra.mxu0 %v1232
        %v1319 = vpop.f32.mrf.mxu0
        %v1320 = vadd.f32 0.0, %v1319
        %v1321 = vpop.f32.mrf.mxu0
        %v1322 = vadd.f32 0.0, %v1321
        %1323 = vmatmul.bf16.gmra.mxu0 %v1235
        %v1324 = vpop.f32.mrf.mxu0
        %v1325 = vadd.f32 0.0, %v1324
        %v1326 = vpop.f32.mrf.mxu0
        %v1327 = vadd.f32 0.0, %v1326
        %1328 = vmatmul.bf16.gmra.mxu0 %v1238
        %v1329 = vpop.f32.mrf.mxu0
        %v1330 = vadd.f32 0.0, %v1329
        %v1331 = vpop.f32.mrf.mxu0
        %v1332 = vadd.f32 0.0, %v1331
        %1333 = vmatmul.bf16.gmra.mxu0 %v1241
        %v1334 = vpop.f32.mrf.mxu0
        %v1335 = vadd.f32 0.0, %v1334
        %v1336 = vpop.f32.mrf.mxu0
        %v1337 = vadd.f32 0.0, %v1336
        %1338 = vmatmul.bf16.gmra.mxu0 %v1244
        %v1339 = vpop.f32.mrf.mxu0
        %v1340 = vadd.f32 0.0, %v1339
        %v1341 = vpop.f32.mrf.mxu0
        %v1342 = vadd.f32 0.0, %v1341
        %1343 = vmatmul.bf16.gmra.mxu0 %v1247
        %v1344 = vpop.f32.mrf.mxu0
        %v1345 = vadd.f32 0.0, %v1344
        %v1346 = vpop.f32.mrf.mxu0
        %v1347 = vadd.f32 0.0, %v1346
        %1348 = vmatmul.bf16.gmra.mxu0 %v1250
        %v1349 = vpop.f32.mrf.mxu0
        %v1350 = vadd.f32 0.0, %v1349
        %v1351 = vpop.f32.mrf.mxu0
        %v1352 = vadd.f32 0.0, %v1351
        %1353 = vdwg.mxu0
        %v1354 = vadd.f32 %v993, %v1265
        %v1355 = vadd.f32 %v994, %v1267
        %v1356 = vadd.f32 %v995, %v1270
        %v1357 = vadd.f32 %v996, %v1272
        %v1358 = vadd.f32 %v997, %v1275
        %v1359 = vadd.f32 %v998, %v1277
        %v1360 = vadd.f32 %v999, %v1280
        %v1361 = vadd.f32 %v1000, %v1282
        %v1362 = vadd.f32 %v1001, %v1285
        %v1363 = vadd.f32 %v1002, %v1287
        %v1364 = vadd.f32 %v1003, %v1290
        %v1365 = vadd.f32 %v1004, %v1292
        %v1366 = vadd.f32 %v1005, %v1295
        %v1367 = vadd.f32 %v1006, %v1297
        %v1368 = vadd.f32 %v1007, %v1300
        %v1369 = vadd.f32 %v1008, %v1302
        %v1370 = vadd.f32 %v1009, %v1305
        %v1371 = vadd.f32 %v1010, %v1307
        %v1372 = vadd.f32 %v1011, %v1310
        %v1373 = vadd.f32 %v1012, %v1312
        %v1374 = vadd.f32 %v1013, %v1315
        %v1375 = vadd.f32 %v1014, %v1317
        %v1376 = vadd.f32 %v1015, %v1320
        %v1377 = vadd.f32 %v1016, %v1322
        %v1378 = vadd.f32 %v1017, %v1325
        %v1379 = vadd.f32 %v1018, %v1327
        %v1380 = vadd.f32 %v1019, %v1330
        %v1381 = vadd.f32 %v1020, %v1332
        %v1382 = vadd.f32 %v1021, %v1335
        %v1383 = vadd.f32 %v1022, %v1337
        %v1384 = vadd.f32 %v1023, %v1340
        %v1385 = vadd.f32 %v1024, %v1342
        %v1386 = vadd.f32 %v1025, %v1345
        %v1387 = vadd.f32 %v1026, %v1347
        %v1388 = vadd.f32 %v1027, %v1350
        %v1389 = vadd.f32 %v1028, %v1352
        %v1390 = vld [vmem:[%s206 + $0x98] sm:$0x3]
        %s1391 = scalar_lea.vmem %s210, 8
        %v1392 = vld [vmem:[%s1391] sm:$0x3]
        %v1394 = vunpack.c.l.b16 %v1390
        %v1395 = vpack.c.b16 %v1394, %v1394
        %vm1396 = vsmask.f32 6400
        %v1398 = vshrl.u32 %v1142, 16
        %v1400 = vrot.slane %v1398, 1
        %v1401 = vshll.u32 %v1142, 16
        %v1403 = vrot.slane %v1401, 2
        %v1404 = vor.u32 %v1400, %v1403
        %v1406 = vshrl.u32 %v1143, 16
        %v1408 = vrot.slane %v1406, 1
        %v1409 = vshll.u32 %v1143, 16
        %v1411 = vrot.slane %v1409, 2
        %v1412 = vor.u32 %v1408, %v1411
        %v1413 = vsel %vm1396, %v1404, %v1412
        %v1415 = vshrl.u32 %v1144, 16
        %v1417 = vrot.slane %v1415, 1
        %v1418 = vshll.u32 %v1144, 16
        %v1420 = vrot.slane %v1418, 2
        %v1421 = vor.u32 %v1417, %v1420
        %v1422 = vsel %vm1396, %v1412, %v1421
        %v1424 = vshrl.u32 %v1145, 16
        %v1426 = vrot.slane %v1424, 1
        %v1427 = vshll.u32 %v1145, 16
        %v1429 = vrot.slane %v1427, 2
        %v1430 = vor.u32 %v1426, %v1429
        %v1431 = vsel %vm1396, %v1421, %v1430
        %v1433 = vshrl.u32 %v1146, 16
        %v1435 = vrot.slane %v1433, 1
        %v1436 = vshll.u32 %v1146, 16
        %v1438 = vrot.slane %v1436, 2
        %v1439 = vor.u32 %v1435, %v1438
        %v1440 = vsel %vm1396, %v1430, %v1439
        %v1442 = vshrl.u32 %v1147, 16
        %v1444 = vrot.slane %v1442, 1
        %v1445 = vshll.u32 %v1147, 16
        %v1447 = vrot.slane %v1445, 2
        %v1448 = vor.u32 %v1444, %v1447
        %v1449 = vsel %vm1396, %v1439, %v1448
        %v1451 = vshrl.u32 %v1148, 16
        %v1453 = vrot.slane %v1451, 1
        %v1454 = vshll.u32 %v1148, 16
        %v1456 = vrot.slane %v1454, 2
        %v1457 = vor.u32 %v1453, %v1456
        %v1458 = vsel %vm1396, %v1448, %v1457
        %v1460 = vshrl.u32 %v1149, 16
        %v1462 = vrot.slane %v1460, 1
        %v1463 = vshll.u32 %v1149, 16
        %v1465 = vrot.slane %v1463, 2
        %v1466 = vor.u32 %v1462, %v1465
        %v1467 = vsel %vm1396, %v1457, %v1466
        %v1469 = vshrl.u32 %v1150, 16
        %v1471 = vrot.slane %v1469, 1
        %v1472 = vshll.u32 %v1150, 16
        %v1474 = vrot.slane %v1472, 2
        %v1475 = vor.u32 %v1471, %v1474
        %v1476 = vsel %vm1396, %v1466, %v1475
        %v1478 = vshrl.u32 %v1151, 16
        %v1480 = vrot.slane %v1478, 1
        %v1481 = vshll.u32 %v1151, 16
        %v1483 = vrot.slane %v1481, 2
        %v1484 = vor.u32 %v1480, %v1483
        %v1485 = vsel %vm1396, %v1475, %v1484
        %v1487 = vshrl.u32 %v1152, 16
        %v1489 = vrot.slane %v1487, 1
        %v1490 = vshll.u32 %v1152, 16
        %v1492 = vrot.slane %v1490, 2
        %v1493 = vor.u32 %v1489, %v1492
        %v1494 = vsel %vm1396, %v1484, %v1493
        %v1496 = vshrl.u32 %v1153, 16
        %v1498 = vrot.slane %v1496, 1
        %v1499 = vshll.u32 %v1153, 16
        %v1501 = vrot.slane %v1499, 2
        %v1502 = vor.u32 %v1498, %v1501
        %v1503 = vsel %vm1396, %v1493, %v1502
        %v1505 = vshrl.u32 %v1154, 16
        %v1507 = vrot.slane %v1505, 1
        %v1508 = vshll.u32 %v1154, 16
        %v1510 = vrot.slane %v1508, 2
        %v1511 = vor.u32 %v1507, %v1510
        %v1512 = vsel %vm1396, %v1502, %v1511
        %v1514 = vshrl.u32 %v1155, 16
        %v1516 = vrot.slane %v1514, 1
        %v1517 = vshll.u32 %v1155, 16
        %v1519 = vrot.slane %v1517, 2
        %v1520 = vor.u32 %v1516, %v1519
        %v1521 = vsel %vm1396, %v1511, %v1520
        %v1523 = vshrl.u32 %v1156, 16
        %v1525 = vrot.slane %v1523, 1
        %v1526 = vshll.u32 %v1156, 16
        %v1528 = vrot.slane %v1526, 2
        %v1529 = vor.u32 %v1525, %v1528
        %v1530 = vsel %vm1396, %v1520, %v1529
        %v1532 = vshrl.u32 %v1157, 16
        %v1534 = vrot.slane %v1532, 1
        %v1535 = vshll.u32 %v1157, 16
        %v1537 = vrot.slane %v1535, 2
        %v1538 = vor.u32 %v1534, %v1537
        %v1539 = vsel %vm1396, %v1529, %v1538
        %v1541 = vshrl.u32 %v1158, 16
        %v1543 = vrot.slane %v1541, 1
        %v1544 = vshll.u32 %v1158, 16
        %v1546 = vrot.slane %v1544, 2
        %v1547 = vor.u32 %v1543, %v1546
        %v1548 = vsel %vm1396, %v1538, %v1547
        %v1550 = vshrl.u32 %v1159, 16
        %v1552 = vrot.slane %v1550, 1
        %v1553 = vshll.u32 %v1159, 16
        %v1555 = vrot.slane %v1553, 2
        %v1556 = vor.u32 %v1552, %v1555
        %v1557 = vsel %vm1396, %v1547, %v1556
        %v1559 = vshrl.u32 %v1395, 16
        %v1561 = vrot.slane %v1559, 1
        %v1562 = vshll.u32 %v1395, 16
        %v1564 = vrot.slane %v1562, 2
        %v1565 = vor.u32 %v1561, %v1564
        %v1566 = vsel %vm1396, %v1556, %v1565
        %v1568 = vsel %vm497, %v1413, 0
        %v1571 = vsel %vm497, %v1422, 0
        %v1574 = vsel %vm497, %v1431, 0
        %v1577 = vsel %vm497, %v1440, 0
        %v1580 = vsel %vm497, %v1449, 0
        %v1583 = vsel %vm497, %v1458, 0
        %v1586 = vsel %vm497, %v1467, 0
        %v1589 = vsel %vm497, %v1476, 0
        %v1592 = vsel %vm497, %v1485, 0
        %v1595 = vsel %vm497, %v1494, 0
        %v1598 = vsel %vm497, %v1503, 0
        %v1601 = vsel %vm497, %v1512, 0
        %v1604 = vsel %vm497, %v1521, 0
        %v1607 = vsel %vm497, %v1530, 0
        %v1610 = vsel %vm497, %v1539, 0
        %v1613 = vsel %vm497, %v1548, 0
        %v1616 = vsel %vm497, %v1557, 0
        %v1619 = vsel %vm497, %v1566, 0
        %v1622 = vsel %vm552, %v1392, 0
        %1624 = vmatpush.bf16.msra.mxu0 0
        %1625 = vmatpush.bf16.msra.mxu0 0
        %1626 = vmatpush.bf16.msra.mxu0 0
        %1627 = vmatpush.bf16.msra.mxu0 0
        %1628 = vmatpush.bf16.msra.mxu0 0
        %1629 = vmatpush.bf16.msra.mxu0 0
        %1630 = vmatpush.bf16.msra.mxu0 0
        %1631 = vmatpush.bf16.msra.mxu0 %v1622
        %1632 = vmatmul.bf16.gmra.mxu0 %v1568
        %v1633 = vpop.f32.mrf.mxu0
        %v1634 = vadd.f32 0.0, %v1633
        %v1635 = vpop.f32.mrf.mxu0
        %v1636 = vadd.f32 0.0, %v1635
        %1637 = vmatmul.bf16.gmra.mxu0 %v1571
        %v1638 = vpop.f32.mrf.mxu0
        %v1639 = vadd.f32 0.0, %v1638
        %v1640 = vpop.f32.mrf.mxu0
        %v1641 = vadd.f32 0.0, %v1640
        %1642 = vmatmul.bf16.gmra.mxu0 %v1574
        %v1643 = vpop.f32.mrf.mxu0
        %v1644 = vadd.f32 0.0, %v1643
        %v1645 = vpop.f32.mrf.mxu0
        %v1646 = vadd.f32 0.0, %v1645
        %1647 = vmatmul.bf16.gmra.mxu0 %v1577
        %v1648 = vpop.f32.mrf.mxu0
        %v1649 = vadd.f32 0.0, %v1648
        %v1650 = vpop.f32.mrf.mxu0
        %v1651 = vadd.f32 0.0, %v1650
        %1652 = vmatmul.bf16.gmra.mxu0 %v1580
        %v1653 = vpop.f32.mrf.mxu0
        %v1654 = vadd.f32 0.0, %v1653
        %v1655 = vpop.f32.mrf.mxu0
        %v1656 = vadd.f32 0.0, %v1655
        %1657 = vmatmul.bf16.gmra.mxu0 %v1583
        %v1658 = vpop.f32.mrf.mxu0
        %v1659 = vadd.f32 0.0, %v1658
        %v1660 = vpop.f32.mrf.mxu0
        %v1661 = vadd.f32 0.0, %v1660
        %1662 = vmatmul.bf16.gmra.mxu0 %v1586
        %v1663 = vpop.f32.mrf.mxu0
        %v1664 = vadd.f32 0.0, %v1663
        %v1665 = vpop.f32.mrf.mxu0
        %v1666 = vadd.f32 0.0, %v1665
        %1667 = vmatmul.bf16.gmra.mxu0 %v1589
        %v1668 = vpop.f32.mrf.mxu0
        %v1669 = vadd.f32 0.0, %v1668
        %v1670 = vpop.f32.mrf.mxu0
        %v1671 = vadd.f32 0.0, %v1670
        %1672 = vmatmul.bf16.gmra.mxu0 %v1592
        %v1673 = vpop.f32.mrf.mxu0
        %v1674 = vadd.f32 0.0, %v1673
        %v1675 = vpop.f32.mrf.mxu0
        %v1676 = vadd.f32 0.0, %v1675
        %1677 = vmatmul.bf16.gmra.mxu0 %v1595
        %v1678 = vpop.f32.mrf.mxu0
        %v1679 = vadd.f32 0.0, %v1678
        %v1680 = vpop.f32.mrf.mxu0
        %v1681 = vadd.f32 0.0, %v1680
        %1682 = vmatmul.bf16.gmra.mxu0 %v1598
        %v1683 = vpop.f32.mrf.mxu0
        %v1684 = vadd.f32 0.0, %v1683
        %v1685 = vpop.f32.mrf.mxu0
        %v1686 = vadd.f32 0.0, %v1685
        %1687 = vmatmul.bf16.gmra.mxu0 %v1601
        %v1688 = vpop.f32.mrf.mxu0
        %v1689 = vadd.f32 0.0, %v1688
        %v1690 = vpop.f32.mrf.mxu0
        %v1691 = vadd.f32 0.0, %v1690
        %1692 = vmatmul.bf16.gmra.mxu0 %v1604
        %v1693 = vpop.f32.mrf.mxu0
        %v1694 = vadd.f32 0.0, %v1693
        %v1695 = vpop.f32.mrf.mxu0
        %v1696 = vadd.f32 0.0, %v1695
        %1697 = vmatmul.bf16.gmra.mxu0 %v1607
        %v1698 = vpop.f32.mrf.mxu0
        %v1699 = vadd.f32 0.0, %v1698
        %v1700 = vpop.f32.mrf.mxu0
        %v1701 = vadd.f32 0.0, %v1700
        %1702 = vmatmul.bf16.gmra.mxu0 %v1610
        %v1703 = vpop.f32.mrf.mxu0
        %v1704 = vadd.f32 0.0, %v1703
        %v1705 = vpop.f32.mrf.mxu0
        %v1706 = vadd.f32 0.0, %v1705
        %1707 = vmatmul.bf16.gmra.mxu0 %v1613
        %v1708 = vpop.f32.mrf.mxu0
        %v1709 = vadd.f32 0.0, %v1708
        %v1710 = vpop.f32.mrf.mxu0
        %v1711 = vadd.f32 0.0, %v1710
        %1712 = vmatmul.bf16.gmra.mxu0 %v1616
        %v1713 = vpop.f32.mrf.mxu0
        %v1714 = vadd.f32 0.0, %v1713
        %v1715 = vpop.f32.mrf.mxu0
        %v1716 = vadd.f32 0.0, %v1715
        %1717 = vmatmul.bf16.gmra.mxu0 %v1619
        %v1718 = vpop.f32.mrf.mxu0
        %v1719 = vadd.f32 0.0, %v1718
        %v1720 = vpop.f32.mrf.mxu0
        %v1721 = vadd.f32 0.0, %v1720
        %1722 = vdwg.mxu0
        %v1723 = vadd.f32 %v1354, %v1634
        %v1724 = vadd.f32 %v1355, %v1636
        %v1725 = vadd.f32 %v1356, %v1639
        %v1726 = vadd.f32 %v1357, %v1641
        %v1727 = vadd.f32 %v1358, %v1644
        %v1728 = vadd.f32 %v1359, %v1646
        %v1729 = vadd.f32 %v1360, %v1649
        %v1730 = vadd.f32 %v1361, %v1651
        %v1731 = vadd.f32 %v1362, %v1654
        %v1732 = vadd.f32 %v1363, %v1656
        %v1733 = vadd.f32 %v1364, %v1659
        %v1734 = vadd.f32 %v1365, %v1661
        %v1735 = vadd.f32 %v1366, %v1664
        %v1736 = vadd.f32 %v1367, %v1666
        %v1737 = vadd.f32 %v1368, %v1669
        %v1738 = vadd.f32 %v1369, %v1671
        %v1739 = vadd.f32 %v1370, %v1674
        %v1740 = vadd.f32 %v1371, %v1676
        %v1741 = vadd.f32 %v1372, %v1679
        %v1742 = vadd.f32 %v1373, %v1681
        %v1743 = vadd.f32 %v1374, %v1684
        %v1744 = vadd.f32 %v1375, %v1686
        %v1745 = vadd.f32 %v1376, %v1689
        %v1746 = vadd.f32 %v1377, %v1691
        %v1747 = vadd.f32 %v1378, %v1694
        %v1748 = vadd.f32 %v1379, %v1696
        %v1749 = vadd.f32 %v1380, %v1699
        %v1750 = vadd.f32 %v1381, %v1701
        %v1751 = vadd.f32 %v1382, %v1704
        %v1752 = vadd.f32 %v1383, %v1706
        %v1753 = vadd.f32 %v1384, %v1709
        %v1754 = vadd.f32 %v1385, %v1711
        %v1755 = vadd.f32 %v1386, %v1714
        %v1756 = vadd.f32 %v1387, %v1716
        %v1757 = vadd.f32 %v1388, %v1719
        %v1758 = vadd.f32 %v1389, %v1721
        %v1759 = vld [vmem:[%s206 + $0x8] sm:$0xc]
        %s1760 = scalar_lea.vmem %s210, 10
        %v1761 = vld [vmem:[%s1760] sm:$0x3]
        %v1763 = vunpack.c.l.b16 %v1759
        %v1764 = vpack.c.b16 %v1106, %v1763
        %vm1765 = vcmask 1045504
        %v1766 = vrot.slane %v1764, 2
        %v1767 = vrot.slane %v1143, 2
        %v1768 = vsel %vm1765, %v1766, %v1767
        %v1769 = vrot.slane %v1144, 2
        %v1770 = vsel %vm1765, %v1767, %v1769
        %v1771 = vrot.slane %v1145, 2
        %v1772 = vsel %vm1765, %v1769, %v1771
        %v1773 = vrot.slane %v1146, 2
        %v1774 = vsel %vm1765, %v1771, %v1773
        %v1775 = vrot.slane %v1147, 2
        %v1776 = vsel %vm1765, %v1773, %v1775
        %v1777 = vrot.slane %v1148, 2
        %v1778 = vsel %vm1765, %v1775, %v1777
        %v1779 = vrot.slane %v1149, 2
        %v1780 = vsel %vm1765, %v1777, %v1779
        %v1781 = vrot.slane %v1150, 2
        %v1782 = vsel %vm1765, %v1779, %v1781
        %v1783 = vrot.slane %v1151, 2
        %v1784 = vsel %vm1765, %v1781, %v1783
        %v1785 = vrot.slane %v1152, 2
        %v1786 = vsel %vm1765, %v1783, %v1785
        %v1787 = vrot.slane %v1153, 2
        %v1788 = vsel %vm1765, %v1785, %v1787
        %v1789 = vrot.slane %v1154, 2
        %v1790 = vsel %vm1765, %v1787, %v1789
        %v1791 = vrot.slane %v1155, 2
        %v1792 = vsel %vm1765, %v1789, %v1791
        %v1793 = vrot.slane %v1156, 2
        %v1794 = vsel %vm1765, %v1791, %v1793
        %v1795 = vrot.slane %v1157, 2
        %v1796 = vsel %vm1765, %v1793, %v1795
        %v1797 = vrot.slane %v1158, 2
        %v1798 = vsel %vm1765, %v1795, %v1797
        %v1799 = vrot.slane %v1159, 2
        %v1800 = vsel %vm1765, %v1797, %v1799
        %v1801 = vrot.slane %v1395, 2
        %v1802 = vsel %vm1765, %v1799, %v1801
        %v1804 = vsel %vm497, %v1768, 0
        %v1807 = vsel %vm497, %v1770, 0
        %v1810 = vsel %vm497, %v1772, 0
        %v1813 = vsel %vm497, %v1774, 0
        %v1816 = vsel %vm497, %v1776, 0
        %v1819 = vsel %vm497, %v1778, 0
        %v1822 = vsel %vm497, %v1780, 0
        %v1825 = vsel %vm497, %v1782, 0
        %v1828 = vsel %vm497, %v1784, 0
        %v1831 = vsel %vm497, %v1786, 0
        %v1834 = vsel %vm497, %v1788, 0
        %v1837 = vsel %vm497, %v1790, 0
        %v1840 = vsel %vm497, %v1792, 0
        %v1843 = vsel %vm497, %v1794, 0
        %v1846 = vsel %vm497, %v1796, 0
        %v1849 = vsel %vm497, %v1798, 0
        %v1852 = vsel %vm497, %v1800, 0
        %v1855 = vsel %vm497, %v1802, 0
        %v1858 = vsel %vm552, %v1761, 0
        %1860 = vmatpush.bf16.msra.mxu0 0
        %1861 = vmatpush.bf16.msra.mxu0 0
        %1862 = vmatpush.bf16.msra.mxu0 0
        %1863 = vmatpush.bf16.msra.mxu0 0
        %1864 = vmatpush.bf16.msra.mxu0 0
        %1865 = vmatpush.bf16.msra.mxu0 0
        %1866 = vmatpush.bf16.msra.mxu0 0
        %1867 = vmatpush.bf16.msra.mxu0 %v1858
        %1868 = vmatmul.bf16.gmra.mxu0 %v1804
        %v1869 = vpop.f32.mrf.mxu0
        %v1870 = vadd.f32 0.0, %v1869
        %v1871 = vpop.f32.mrf.mxu0
        %v1872 = vadd.f32 0.0, %v1871
        %1873 = vmatmul.bf16.gmra.mxu0 %v1807
        %v1874 = vpop.f32.mrf.mxu0
        %v1875 = vadd.f32 0.0, %v1874
        %v1876 = vpop.f32.mrf.mxu0
        %v1877 = vadd.f32 0.0, %v1876
        %1878 = vmatmul.bf16.gmra.mxu0 %v1810
        %v1879 = vpop.f32.mrf.mxu0
        %v1880 = vadd.f32 0.0, %v1879
        %v1881 = vpop.f32.mrf.mxu0
        %v1882 = vadd.f32 0.0, %v1881
        %1883 = vmatmul.bf16.gmra.mxu0 %v1813
        %v1884 = vpop.f32.mrf.mxu0
        %v1885 = vadd.f32 0.0, %v1884
        %v1886 = vpop.f32.mrf.mxu0
        %v1887 = vadd.f32 0.0, %v1886
        %1888 = vmatmul.bf16.gmra.mxu0 %v1816
        %v1889 = vpop.f32.mrf.mxu0
        %v1890 = vadd.f32 0.0, %v1889
        %v1891 = vpop.f32.mrf.mxu0
        %v1892 = vadd.f32 0.0, %v1891
        %1893 = vmatmul.bf16.gmra.mxu0 %v1819
        %v1894 = vpop.f32.mrf.mxu0
        %v1895 = vadd.f32 0.0, %v1894
        %v1896 = vpop.f32.mrf.mxu0
        %v1897 = vadd.f32 0.0, %v1896
        %1898 = vmatmul.bf16.gmra.mxu0 %v1822
        %v1899 = vpop.f32.mrf.mxu0
        %v1900 = vadd.f32 0.0, %v1899
        %v1901 = vpop.f32.mrf.mxu0
        %v1902 = vadd.f32 0.0, %v1901
        %1903 = vmatmul.bf16.gmra.mxu0 %v1825
        %v1904 = vpop.f32.mrf.mxu0
        %v1905 = vadd.f32 0.0, %v1904
        %v1906 = vpop.f32.mrf.mxu0
        %v1907 = vadd.f32 0.0, %v1906
        %1908 = vmatmul.bf16.gmra.mxu0 %v1828
        %v1909 = vpop.f32.mrf.mxu0
        %v1910 = vadd.f32 0.0, %v1909
        %v1911 = vpop.f32.mrf.mxu0
        %v1912 = vadd.f32 0.0, %v1911
        %1913 = vmatmul.bf16.gmra.mxu0 %v1831
        %v1914 = vpop.f32.mrf.mxu0
        %v1915 = vadd.f32 0.0, %v1914
        %v1916 = vpop.f32.mrf.mxu0
        %v1917 = vadd.f32 0.0, %v1916
        %1918 = vmatmul.bf16.gmra.mxu0 %v1834
        %v1919 = vpop.f32.mrf.mxu0
        %v1920 = vadd.f32 0.0, %v1919
        %v1921 = vpop.f32.mrf.mxu0
        %v1922 = vadd.f32 0.0, %v1921
        %1923 = vmatmul.bf16.gmra.mxu0 %v1837
        %v1924 = vpop.f32.mrf.mxu0
        %v1925 = vadd.f32 0.0, %v1924
        %v1926 = vpop.f32.mrf.mxu0
        %v1927 = vadd.f32 0.0, %v1926
        %1928 = vmatmul.bf16.gmra.mxu0 %v1840
        %v1929 = vpop.f32.mrf.mxu0
        %v1930 = vadd.f32 0.0, %v1929
        %v1931 = vpop.f32.mrf.mxu0
        %v1932 = vadd.f32 0.0, %v1931
        %1933 = vmatmul.bf16.gmra.mxu0 %v1843
        %v1934 = vpop.f32.mrf.mxu0
        %v1935 = vadd.f32 0.0, %v1934
        %v1936 = vpop.f32.mrf.mxu0
        %v1937 = vadd.f32 0.0, %v1936
        %1938 = vmatmul.bf16.gmra.mxu0 %v1846
        %v1939 = vpop.f32.mrf.mxu0
        %v1940 = vadd.f32 0.0, %v1939
        %v1941 = vpop.f32.mrf.mxu0
        %v1942 = vadd.f32 0.0, %v1941
        %1943 = vmatmul.bf16.gmra.mxu0 %v1849
        %v1944 = vpop.f32.mrf.mxu0
        %v1945 = vadd.f32 0.0, %v1944
        %v1946 = vpop.f32.mrf.mxu0
        %v1947 = vadd.f32 0.0, %v1946
        %1948 = vmatmul.bf16.gmra.mxu0 %v1852
        %v1949 = vpop.f32.mrf.mxu0
        %v1950 = vadd.f32 0.0, %v1949
        %v1951 = vpop.f32.mrf.mxu0
        %v1952 = vadd.f32 0.0, %v1951
        %1953 = vmatmul.bf16.gmra.mxu0 %v1855
        %v1954 = vpop.f32.mrf.mxu0
        %v1955 = vadd.f32 0.0, %v1954
        %v1956 = vpop.f32.mrf.mxu0
        %v1957 = vadd.f32 0.0, %v1956
        %1958 = vdwg.mxu0
        %v1959 = vadd.f32 %v1723, %v1870
        %v1960 = vadd.f32 %v1724, %v1872
        %v1961 = vadd.f32 %v1725, %v1875
        %v1962 = vadd.f32 %v1726, %v1877
        %v1963 = vadd.f32 %v1727, %v1880
        %v1964 = vadd.f32 %v1728, %v1882
        %v1965 = vadd.f32 %v1729, %v1885
        %v1966 = vadd.f32 %v1730, %v1887
        %v1967 = vadd.f32 %v1731, %v1890
        %v1968 = vadd.f32 %v1732, %v1892
        %v1969 = vadd.f32 %v1733, %v1895
        %v1970 = vadd.f32 %v1734, %v1897
        %v1971 = vadd.f32 %v1735, %v1900
        %v1972 = vadd.f32 %v1736, %v1902
        %v1973 = vadd.f32 %v1737, %v1905
        %v1974 = vadd.f32 %v1738, %v1907
        %v1975 = vadd.f32 %v1739, %v1910
        %v1976 = vadd.f32 %v1740, %v1912
        %v1977 = vadd.f32 %v1741, %v1915
        %v1978 = vadd.f32 %v1742, %v1917
        %v1979 = vadd.f32 %v1743, %v1920
        %v1980 = vadd.f32 %v1744, %v1922
        %v1981 = vadd.f32 %v1745, %v1925
        %v1982 = vadd.f32 %v1746, %v1927
        %v1983 = vadd.f32 %v1747, %v1930
        %v1984 = vadd.f32 %v1748, %v1932
        %v1985 = vadd.f32 %v1749, %v1935
        %v1986 = vadd.f32 %v1750, %v1937
        %v1987 = vadd.f32 %v1751, %v1940
        %v1988 = vadd.f32 %v1752, %v1942
        %v1989 = vadd.f32 %v1753, %v1945
        %v1990 = vadd.f32 %v1754, %v1947
        %v1991 = vadd.f32 %v1755, %v1950
        %v1992 = vadd.f32 %v1756, %v1952
        %v1993 = vadd.f32 %v1757, %v1955
        %v1994 = vadd.f32 %v1758, %v1957
        %v1995 = vld [vmem:[%s206 + $0x10] sm:$0xc]
        %v1996 = vld [vmem:[%s206 + $0x14] sm:$0xf]
        %v1997 = vld [vmem:[%s206 + $0x18] sm:$0xf]
        %v1998 = vld [vmem:[%s206 + $0x1c] sm:$0xf]
        %v1999 = vld [vmem:[%s206 + $0x20] sm:$0xf]
        %v2000 = vld [vmem:[%s206 + $0x24] sm:$0xf]
        %v2001 = vld [vmem:[%s206 + $0x28] sm:$0xf]
        %v2002 = vld [vmem:[%s206 + $0x2c] sm:$0xf]
        %v2003 = vld [vmem:[%s206 + $0x30] sm:$0xf]
        %v2004 = vld [vmem:[%s206 + $0x34] sm:$0xf]
        %v2005 = vld [vmem:[%s206 + $0x38] sm:$0xf]
        %v2006 = vld [vmem:[%s206 + $0x3c] sm:$0xf]
        %v2007 = vld [vmem:[%s206 + $0x40] sm:$0xf]
        %v2008 = vld [vmem:[%s206 + $0x44] sm:$0xf]
        %v2009 = vld [vmem:[%s206 + $0x48] sm:$0xf]
        %v2010 = vld [vmem:[%s206 + $0x4c] sm:$0xf]
        %v2011 = vld [vmem:[%s206 + $0x50] sm:$0xf]
        %v2012 = vld [vmem:[%s206 + $0x54] sm:$0xf]
        %v2013 = vld [vmem:[%s206 + $0x58] sm:$0xf]
        %v2014 = vld [vmem:[%s206 + $0x5c] sm:$0xf]
        %v2015 = vld [vmem:[%s206 + $0x60] sm:$0xf]
        %v2016 = vld [vmem:[%s206 + $0x64] sm:$0xf]
        %v2017 = vld [vmem:[%s206 + $0x68] sm:$0xf]
        %v2018 = vld [vmem:[%s206 + $0x6c] sm:$0xf]
        %v2019 = vld [vmem:[%s206 + $0x70] sm:$0xf]
        %v2020 = vld [vmem:[%s206 + $0x74] sm:$0xf]
        %v2021 = vld [vmem:[%s206 + $0x78] sm:$0xf]
        %v2022 = vld [vmem:[%s206 + $0x7c] sm:$0xf]
        %v2023 = vld [vmem:[%s206 + $0x80] sm:$0xf]
        %v2024 = vld [vmem:[%s206 + $0x84] sm:$0xf]
        %v2025 = vld [vmem:[%s206 + $0x88] sm:$0xf]
        %v2026 = vld [vmem:[%s206 + $0x8c] sm:$0xf]
        %v2027 = vld [vmem:[%s206 + $0x90] sm:$0xf]
        %v2028 = vld [vmem:[%s206 + $0x94] sm:$0xf]
        %v2029 = vld [vmem:[%s206 + $0x98] sm:$0xf]
        %v2030 = vld [vmem:[%s206 + $0x9c] sm:$0xf]
        %v2031 = vld [vmem:[%s206 + $0xa0] sm:$0x3]
        %s2032 = scalar_lea.vmem %s210, 12
        %v2033 = vld [vmem:[%s2032] sm:$0x3]
        %v2071 = vunpack.c.l.b16 %v1995
        %v2072 = vunpack.c.l.b16 %v1996
        %v2073 = vunpack.c.l.b16 %v1997
        %v2074 = vunpack.c.l.b16 %v1998
        %v2075 = vunpack.c.l.b16 %v1999
        %v2076 = vunpack.c.l.b16 %v2000
        %v2077 = vunpack.c.l.b16 %v2001
        %v2078 = vunpack.c.l.b16 %v2002
        %v2079 = vunpack.c.l.b16 %v2003
        %v2080 = vunpack.c.l.b16 %v2004
        %v2081 = vunpack.c.l.b16 %v2005
        %v2082 = vunpack.c.l.b16 %v2006
        %v2083 = vunpack.c.l.b16 %v2007
        %v2084 = vunpack.c.l.b16 %v2008
        %v2085 = vunpack.c.l.b16 %v2009
        %v2086 = vunpack.c.l.b16 %v2010
        %v2087 = vunpack.c.l.b16 %v2011
        %v2088 = vunpack.c.l.b16 %v2012
        %v2089 = vunpack.c.l.b16 %v2013
        %v2090 = vunpack.c.l.b16 %v2014
        %v2091 = vunpack.c.l.b16 %v2015
        %v2092 = vunpack.c.l.b16 %v2016
        %v2093 = vunpack.c.l.b16 %v2017
        %v2094 = vunpack.c.l.b16 %v2018
        %v2095 = vunpack.c.l.b16 %v2019
        %v2096 = vunpack.c.l.b16 %v2020
        %v2097 = vunpack.c.l.b16 %v2021
        %v2098 = vunpack.c.l.b16 %v2022
        %v2099 = vunpack.c.l.b16 %v2023
        %v2100 = vunpack.c.l.b16 %v2024
        %v2101 = vunpack.c.l.b16 %v2025
        %v2102 = vunpack.c.l.b16 %v2026
        %v2103 = vunpack.c.l.b16 %v2027
        %v2104 = vunpack.c.l.b16 %v2028
        %v2105 = vunpack.c.l.b16 %v2029
        %v2106 = vunpack.c.l.b16 %v2030
        %v2107 = vunpack.c.l.b16 %v2031
        %v2108 = vpack.c.b16 %v2072, %v2071
        %v2109 = vpack.c.b16 %v2074, %v2073
        %v2110 = vpack.c.b16 %v2076, %v2075
        %v2111 = vpack.c.b16 %v2078, %v2077
        %v2112 = vpack.c.b16 %v2080, %v2079
        %v2113 = vpack.c.b16 %v2082, %v2081
        %v2114 = vpack.c.b16 %v2084, %v2083
        %v2115 = vpack.c.b16 %v2086, %v2085
        %v2116 = vpack.c.b16 %v2088, %v2087
        %v2117 = vpack.c.b16 %v2090, %v2089
        %v2118 = vpack.c.b16 %v2092, %v2091
        %v2119 = vpack.c.b16 %v2094, %v2093
        %v2120 = vpack.c.b16 %v2096, %v2095
        %v2121 = vpack.c.b16 %v2098, %v2097
        %v2122 = vpack.c.b16 %v2100, %v2099
        %v2123 = vpack.c.b16 %v2102, %v2101
        %v2124 = vpack.c.b16 %v2104, %v2103
        %v2125 = vpack.c.b16 %v2106, %v2105
        %v2126 = vpack.c.b16 %v2107, %v2107
        %v2127 = vrot.slane %v2108, 2
        %v2128 = vrot.slane %v2109, 2
        %v2129 = vsel %vm1765, %v2127, %v2128
        %v2130 = vrot.slane %v2110, 2
        %v2131 = vsel %vm1765, %v2128, %v2130
        %v2132 = vrot.slane %v2111, 2
        %v2133 = vsel %vm1765, %v2130, %v2132
        %v2134 = vrot.slane %v2112, 2
        %v2135 = vsel %vm1765, %v2132, %v2134
        %v2136 = vrot.slane %v2113, 2
        %v2137 = vsel %vm1765, %v2134, %v2136
        %v2138 = vrot.slane %v2114, 2
        %v2139 = vsel %vm1765, %v2136, %v2138
        %v2140 = vrot.slane %v2115, 2
        %v2141 = vsel %vm1765, %v2138, %v2140
        %v2142 = vrot.slane %v2116, 2
        %v2143 = vsel %vm1765, %v2140, %v2142
        %v2144 = vrot.slane %v2117, 2
        %v2145 = vsel %vm1765, %v2142, %v2144
        %v2146 = vrot.slane %v2118, 2
        %v2147 = vsel %vm1765, %v2144, %v2146
        %v2148 = vrot.slane %v2119, 2
        %v2149 = vsel %vm1765, %v2146, %v2148
        %v2150 = vrot.slane %v2120, 2
        %v2151 = vsel %vm1765, %v2148, %v2150
        %v2152 = vrot.slane %v2121, 2
        %v2153 = vsel %vm1765, %v2150, %v2152
        %v2154 = vrot.slane %v2122, 2
        %v2155 = vsel %vm1765, %v2152, %v2154
        %v2156 = vrot.slane %v2123, 2
        %v2157 = vsel %vm1765, %v2154, %v2156
        %v2158 = vrot.slane %v2124, 2
        %v2159 = vsel %vm1765, %v2156, %v2158
        %v2160 = vrot.slane %v2125, 2
        %v2161 = vsel %vm1765, %v2158, %v2160
        %v2162 = vrot.slane %v2126, 2
        %v2163 = vsel %vm1765, %v2160, %v2162
        %v2165 = vsel %vm497, %v2129, 0
        %v2168 = vsel %vm497, %v2131, 0
        %v2171 = vsel %vm497, %v2133, 0
        %v2174 = vsel %vm497, %v2135, 0
        %v2177 = vsel %vm497, %v2137, 0
        %v2180 = vsel %vm497, %v2139, 0
        %v2183 = vsel %vm497, %v2141, 0
        %v2186 = vsel %vm497, %v2143, 0
        %v2189 = vsel %vm497, %v2145, 0
        %v2192 = vsel %vm497, %v2147, 0
        %v2195 = vsel %vm497, %v2149, 0
        %v2198 = vsel %vm497, %v2151, 0
        %v2201 = vsel %vm497, %v2153, 0
        %v2204 = vsel %vm497, %v2155, 0
        %v2207 = vsel %vm497, %v2157, 0
        %v2210 = vsel %vm497, %v2159, 0
        %v2213 = vsel %vm497, %v2161, 0
        %v2216 = vsel %vm497, %v2163, 0
        %v2219 = vsel %vm552, %v2033, 0
        %2221 = vmatpush.bf16.msra.mxu0 0
        %2222 = vmatpush.bf16.msra.mxu0 0
        %2223 = vmatpush.bf16.msra.mxu0 0
        %2224 = vmatpush.bf16.msra.mxu0 0
        %2225 = vmatpush.bf16.msra.mxu0 0
        %2226 = vmatpush.bf16.msra.mxu0 0
        %2227 = vmatpush.bf16.msra.mxu0 0
        %2228 = vmatpush.bf16.msra.mxu0 %v2219
        %2229 = vmatmul.bf16.gmra.mxu0 %v2165
        %v2230 = vpop.f32.mrf.mxu0
        %v2231 = vadd.f32 0.0, %v2230
        %v2232 = vpop.f32.mrf.mxu0
        %v2233 = vadd.f32 0.0, %v2232
        %2234 = vmatmul.bf16.gmra.mxu0 %v2168
        %v2235 = vpop.f32.mrf.mxu0
        %v2236 = vadd.f32 0.0, %v2235
        %v2237 = vpop.f32.mrf.mxu0
        %v2238 = vadd.f32 0.0, %v2237
        %2239 = vmatmul.bf16.gmra.mxu0 %v2171
        %v2240 = vpop.f32.mrf.mxu0
        %v2241 = vadd.f32 0.0, %v2240
        %v2242 = vpop.f32.mrf.mxu0
        %v2243 = vadd.f32 0.0, %v2242
        %2244 = vmatmul.bf16.gmra.mxu0 %v2174
        %v2245 = vpop.f32.mrf.mxu0
        %v2246 = vadd.f32 0.0, %v2245
        %v2247 = vpop.f32.mrf.mxu0
        %v2248 = vadd.f32 0.0, %v2247
        %2249 = vmatmul.bf16.gmra.mxu0 %v2177
        %v2250 = vpop.f32.mrf.mxu0
        %v2251 = vadd.f32 0.0, %v2250
        %v2252 = vpop.f32.mrf.mxu0
        %v2253 = vadd.f32 0.0, %v2252
        %2254 = vmatmul.bf16.gmra.mxu0 %v2180
        %v2255 = vpop.f32.mrf.mxu0
        %v2256 = vadd.f32 0.0, %v2255
        %v2257 = vpop.f32.mrf.mxu0
        %v2258 = vadd.f32 0.0, %v2257
        %2259 = vmatmul.bf16.gmra.mxu0 %v2183
        %v2260 = vpop.f32.mrf.mxu0
        %v2261 = vadd.f32 0.0, %v2260
        %v2262 = vpop.f32.mrf.mxu0
        %v2263 = vadd.f32 0.0, %v2262
        %2264 = vmatmul.bf16.gmra.mxu0 %v2186
        %v2265 = vpop.f32.mrf.mxu0
        %v2266 = vadd.f32 0.0, %v2265
        %v2267 = vpop.f32.mrf.mxu0
        %v2268 = vadd.f32 0.0, %v2267
        %2269 = vmatmul.bf16.gmra.mxu0 %v2189
        %v2270 = vpop.f32.mrf.mxu0
        %v2271 = vadd.f32 0.0, %v2270
        %v2272 = vpop.f32.mrf.mxu0
        %v2273 = vadd.f32 0.0, %v2272
        %2274 = vmatmul.bf16.gmra.mxu0 %v2192
        %v2275 = vpop.f32.mrf.mxu0
        %v2276 = vadd.f32 0.0, %v2275
        %v2277 = vpop.f32.mrf.mxu0
        %v2278 = vadd.f32 0.0, %v2277
        %2279 = vmatmul.bf16.gmra.mxu0 %v2195
        %v2280 = vpop.f32.mrf.mxu0
        %v2281 = vadd.f32 0.0, %v2280
        %v2282 = vpop.f32.mrf.mxu0
        %v2283 = vadd.f32 0.0, %v2282
        %2284 = vmatmul.bf16.gmra.mxu0 %v2198
        %v2285 = vpop.f32.mrf.mxu0
        %v2286 = vadd.f32 0.0, %v2285
        %v2287 = vpop.f32.mrf.mxu0
        %v2288 = vadd.f32 0.0, %v2287
        %2289 = vmatmul.bf16.gmra.mxu0 %v2201
        %v2290 = vpop.f32.mrf.mxu0
        %v2291 = vadd.f32 0.0, %v2290
        %v2292 = vpop.f32.mrf.mxu0
        %v2293 = vadd.f32 0.0, %v2292
        %2294 = vmatmul.bf16.gmra.mxu0 %v2204
        %v2295 = vpop.f32.mrf.mxu0
        %v2296 = vadd.f32 0.0, %v2295
        %v2297 = vpop.f32.mrf.mxu0
        %v2298 = vadd.f32 0.0, %v2297
        %2299 = vmatmul.bf16.gmra.mxu0 %v2207
        %v2300 = vpop.f32.mrf.mxu0
        %v2301 = vadd.f32 0.0, %v2300
        %v2302 = vpop.f32.mrf.mxu0
        %v2303 = vadd.f32 0.0, %v2302
        %2304 = vmatmul.bf16.gmra.mxu0 %v2210
        %v2305 = vpop.f32.mrf.mxu0
        %v2306 = vadd.f32 0.0, %v2305
        %v2307 = vpop.f32.mrf.mxu0
        %v2308 = vadd.f32 0.0, %v2307
        %2309 = vmatmul.bf16.gmra.mxu0 %v2213
        %v2310 = vpop.f32.mrf.mxu0
        %v2311 = vadd.f32 0.0, %v2310
        %v2312 = vpop.f32.mrf.mxu0
        %v2313 = vadd.f32 0.0, %v2312
        %2314 = vmatmul.bf16.gmra.mxu0 %v2216
        %v2315 = vpop.f32.mrf.mxu0
        %v2316 = vadd.f32 0.0, %v2315
        %v2317 = vpop.f32.mrf.mxu0
        %v2318 = vadd.f32 0.0, %v2317
        %2319 = vdwg.mxu0
        %v2320 = vadd.f32 %v1959, %v2231
        %v2321 = vadd.f32 %v1960, %v2233
        %v2322 = vadd.f32 %v1961, %v2236
        %v2323 = vadd.f32 %v1962, %v2238
        %v2324 = vadd.f32 %v1963, %v2241
        %v2325 = vadd.f32 %v1964, %v2243
        %v2326 = vadd.f32 %v1965, %v2246
        %v2327 = vadd.f32 %v1966, %v2248
        %v2328 = vadd.f32 %v1967, %v2251
        %v2329 = vadd.f32 %v1968, %v2253
        %v2330 = vadd.f32 %v1969, %v2256
        %v2331 = vadd.f32 %v1970, %v2258
        %v2332 = vadd.f32 %v1971, %v2261
        %v2333 = vadd.f32 %v1972, %v2263
        %v2334 = vadd.f32 %v1973, %v2266
        %v2335 = vadd.f32 %v1974, %v2268
        %v2336 = vadd.f32 %v1975, %v2271
        %v2337 = vadd.f32 %v1976, %v2273
        %v2338 = vadd.f32 %v1977, %v2276
        %v2339 = vadd.f32 %v1978, %v2278
        %v2340 = vadd.f32 %v1979, %v2281
        %v2341 = vadd.f32 %v1980, %v2283
        %v2342 = vadd.f32 %v1981, %v2286
        %v2343 = vadd.f32 %v1982, %v2288
        %v2344 = vadd.f32 %v1983, %v2291
        %v2345 = vadd.f32 %v1984, %v2293
        %v2346 = vadd.f32 %v1985, %v2296
        %v2347 = vadd.f32 %v1986, %v2298
        %v2348 = vadd.f32 %v1987, %v2301
        %v2349 = vadd.f32 %v1988, %v2303
        %v2350 = vadd.f32 %v1989, %v2306
        %v2351 = vadd.f32 %v1990, %v2308
        %v2352 = vadd.f32 %v1991, %v2311
        %v2353 = vadd.f32 %v1992, %v2313
        %v2354 = vadd.f32 %v1993, %v2316
        %v2355 = vadd.f32 %v1994, %v2318
        %v2356 = vld [vmem:[%s206 + $0xa0] sm:$0x7]
        %s2357 = scalar_lea.vmem %s210, 14
        %v2358 = vld [vmem:[%s2357] sm:$0x3]
        %v2360 = vunpack.c.l.b16 %v2356
        %v2361 = vpack.c.b16 %v2360, %v2360
        %vm2362 = vsmask.f32 5376
        %v2364 = vshrl.u32 %v2108, 16
        %v2366 = vrot.slane %v2364, 2
        %v2367 = vshll.u32 %v2108, 16
        %v2369 = vrot.slane %v2367, 3
        %v2370 = vor.u32 %v2366, %v2369
        %v2372 = vshrl.u32 %v2109, 16
        %v2374 = vrot.slane %v2372, 2
        %v2375 = vshll.u32 %v2109, 16
        %v2377 = vrot.slane %v2375, 3
        %v2378 = vor.u32 %v2374, %v2377
        %v2379 = vsel %vm2362, %v2370, %v2378
        %v2381 = vshrl.u32 %v2110, 16
        %v2383 = vrot.slane %v2381, 2
        %v2384 = vshll.u32 %v2110, 16
        %v2386 = vrot.slane %v2384, 3
        %v2387 = vor.u32 %v2383, %v2386
        %v2388 = vsel %vm2362, %v2378, %v2387
        %v2390 = vshrl.u32 %v2111, 16
        %v2392 = vrot.slane %v2390, 2
        %v2393 = vshll.u32 %v2111, 16
        %v2395 = vrot.slane %v2393, 3
        %v2396 = vor.u32 %v2392, %v2395
        %v2397 = vsel %vm2362, %v2387, %v2396
        %v2399 = vshrl.u32 %v2112, 16
        %v2401 = vrot.slane %v2399, 2
        %v2402 = vshll.u32 %v2112, 16
        %v2404 = vrot.slane %v2402, 3
        %v2405 = vor.u32 %v2401, %v2404
        %v2406 = vsel %vm2362, %v2396, %v2405
        %v2408 = vshrl.u32 %v2113, 16
        %v2410 = vrot.slane %v2408, 2
        %v2411 = vshll.u32 %v2113, 16
        %v2413 = vrot.slane %v2411, 3
        %v2414 = vor.u32 %v2410, %v2413
        %v2415 = vsel %vm2362, %v2405, %v2414
        %v2417 = vshrl.u32 %v2114, 16
        %v2419 = vrot.slane %v2417, 2
        %v2420 = vshll.u32 %v2114, 16
        %v2422 = vrot.slane %v2420, 3
        %v2423 = vor.u32 %v2419, %v2422
        %v2424 = vsel %vm2362, %v2414, %v2423
        %v2426 = vshrl.u32 %v2115, 16
        %v2428 = vrot.slane %v2426, 2
        %v2429 = vshll.u32 %v2115, 16
        %v2431 = vrot.slane %v2429, 3
        %v2432 = vor.u32 %v2428, %v2431
        %v2433 = vsel %vm2362, %v2423, %v2432
        %v2435 = vshrl.u32 %v2116, 16
        %v2437 = vrot.slane %v2435, 2
        %v2438 = vshll.u32 %v2116, 16
        %v2440 = vrot.slane %v2438, 3
        %v2441 = vor.u32 %v2437, %v2440
        %v2442 = vsel %vm2362, %v2432, %v2441
        %v2444 = vshrl.u32 %v2117, 16
        %v2446 = vrot.slane %v2444, 2
        %v2447 = vshll.u32 %v2117, 16
        %v2449 = vrot.slane %v2447, 3
        %v2450 = vor.u32 %v2446, %v2449
        %v2451 = vsel %vm2362, %v2441, %v2450
        %v2453 = vshrl.u32 %v2118, 16
        %v2455 = vrot.slane %v2453, 2
        %v2456 = vshll.u32 %v2118, 16
        %v2458 = vrot.slane %v2456, 3
        %v2459 = vor.u32 %v2455, %v2458
        %v2460 = vsel %vm2362, %v2450, %v2459
        %v2462 = vshrl.u32 %v2119, 16
        %v2464 = vrot.slane %v2462, 2
        %v2465 = vshll.u32 %v2119, 16
        %v2467 = vrot.slane %v2465, 3
        %v2468 = vor.u32 %v2464, %v2467
        %v2469 = vsel %vm2362, %v2459, %v2468
        %v2471 = vshrl.u32 %v2120, 16
        %v2473 = vrot.slane %v2471, 2
        %v2474 = vshll.u32 %v2120, 16
        %v2476 = vrot.slane %v2474, 3
        %v2477 = vor.u32 %v2473, %v2476
        %v2478 = vsel %vm2362, %v2468, %v2477
        %v2480 = vshrl.u32 %v2121, 16
        %v2482 = vrot.slane %v2480, 2
        %v2483 = vshll.u32 %v2121, 16
        %v2485 = vrot.slane %v2483, 3
        %v2486 = vor.u32 %v2482, %v2485
        %v2487 = vsel %vm2362, %v2477, %v2486
        %v2489 = vshrl.u32 %v2122, 16
        %v2491 = vrot.slane %v2489, 2
        %v2492 = vshll.u32 %v2122, 16
        %v2494 = vrot.slane %v2492, 3
        %v2495 = vor.u32 %v2491, %v2494
        %v2496 = vsel %vm2362, %v2486, %v2495
        %v2498 = vshrl.u32 %v2123, 16
        %v2500 = vrot.slane %v2498, 2
        %v2501 = vshll.u32 %v2123, 16
        %v2503 = vrot.slane %v2501, 3
        %v2504 = vor.u32 %v2500, %v2503
        %v2505 = vsel %vm2362, %v2495, %v2504
        %v2507 = vshrl.u32 %v2124, 16
        %v2509 = vrot.slane %v2507, 2
        %v2510 = vshll.u32 %v2124, 16
        %v2512 = vrot.slane %v2510, 3
        %v2513 = vor.u32 %v2509, %v2512
        %v2514 = vsel %vm2362, %v2504, %v2513
        %v2516 = vshrl.u32 %v2125, 16
        %v2518 = vrot.slane %v2516, 2
        %v2519 = vshll.u32 %v2125, 16
        %v2521 = vrot.slane %v2519, 3
        %v2522 = vor.u32 %v2518, %v2521
        %v2523 = vsel %vm2362, %v2513, %v2522
        %v2525 = vshrl.u32 %v2361, 16
        %v2527 = vrot.slane %v2525, 2
        %v2528 = vshll.u32 %v2361, 16
        %v2530 = vrot.slane %v2528, 3
        %v2531 = vor.u32 %v2527, %v2530
        %v2532 = vsel %vm2362, %v2522, %v2531
        %v2534 = vsel %vm497, %v2379, 0
        %v2537 = vsel %vm497, %v2388, 0
        %v2540 = vsel %vm497, %v2397, 0
        %v2543 = vsel %vm497, %v2406, 0
        %v2546 = vsel %vm497, %v2415, 0
        %v2549 = vsel %vm497, %v2424, 0
        %v2552 = vsel %vm497, %v2433, 0
        %v2555 = vsel %vm497, %v2442, 0
        %v2558 = vsel %vm497, %v2451, 0
        %v2561 = vsel %vm497, %v2460, 0
        %v2564 = vsel %vm497, %v2469, 0
        %v2567 = vsel %vm497, %v2478, 0
        %v2570 = vsel %vm497, %v2487, 0
        %v2573 = vsel %vm497, %v2496, 0
        %v2576 = vsel %vm497, %v2505, 0
        %v2579 = vsel %vm497, %v2514, 0
        %v2582 = vsel %vm497, %v2523, 0
        %v2585 = vsel %vm497, %v2532, 0
        %v2588 = vsel %vm552, %v2358, 0
        %2590 = vmatpush.bf16.msra.mxu0 0
        %2591 = vmatpush.bf16.msra.mxu0 0
        %2592 = vmatpush.bf16.msra.mxu0 0
        %2593 = vmatpush.bf16.msra.mxu0 0
        %2594 = vmatpush.bf16.msra.mxu0 0
        %2595 = vmatpush.bf16.msra.mxu0 0
        %2596 = vmatpush.bf16.msra.mxu0 0
        %2597 = vmatpush.bf16.msra.mxu0 %v2588
        %2598 = vmatmul.bf16.gmra.mxu0 %v2534
        %v2599 = vpop.f32.mrf.mxu0
        %v2600 = vadd.f32 0.0, %v2599
        %v2601 = vpop.f32.mrf.mxu0
        %v2602 = vadd.f32 0.0, %v2601
        %2603 = vmatmul.bf16.gmra.mxu0 %v2537
        %v2604 = vpop.f32.mrf.mxu0
        %v2605 = vadd.f32 0.0, %v2604
        %v2606 = vpop.f32.mrf.mxu0
        %v2607 = vadd.f32 0.0, %v2606
        %2608 = vmatmul.bf16.gmra.mxu0 %v2540
        %v2609 = vpop.f32.mrf.mxu0
        %v2610 = vadd.f32 0.0, %v2609
        %v2611 = vpop.f32.mrf.mxu0
        %v2612 = vadd.f32 0.0, %v2611
        %2613 = vmatmul.bf16.gmra.mxu0 %v2543
        %v2614 = vpop.f32.mrf.mxu0
        %v2615 = vadd.f32 0.0, %v2614
        %v2616 = vpop.f32.mrf.mxu0
        %v2617 = vadd.f32 0.0, %v2616
        %2618 = vmatmul.bf16.gmra.mxu0 %v2546
        %v2619 = vpop.f32.mrf.mxu0
        %v2620 = vadd.f32 0.0, %v2619
        %v2621 = vpop.f32.mrf.mxu0
        %v2622 = vadd.f32 0.0, %v2621
        %2623 = vmatmul.bf16.gmra.mxu0 %v2549
        %v2624 = vpop.f32.mrf.mxu0
        %v2625 = vadd.f32 0.0, %v2624
        %v2626 = vpop.f32.mrf.mxu0
        %v2627 = vadd.f32 0.0, %v2626
        %2628 = vmatmul.bf16.gmra.mxu0 %v2552
        %v2629 = vpop.f32.mrf.mxu0
        %v2630 = vadd.f32 0.0, %v2629
        %v2631 = vpop.f32.mrf.mxu0
        %v2632 = vadd.f32 0.0, %v2631
        %2633 = vmatmul.bf16.gmra.mxu0 %v2555
        %v2634 = vpop.f32.mrf.mxu0
        %v2635 = vadd.f32 0.0, %v2634
        %v2636 = vpop.f32.mrf.mxu0
        %v2637 = vadd.f32 0.0, %v2636
        %2638 = vmatmul.bf16.gmra.mxu0 %v2558
        %v2639 = vpop.f32.mrf.mxu0
        %v2640 = vadd.f32 0.0, %v2639
        %v2641 = vpop.f32.mrf.mxu0
        %v2642 = vadd.f32 0.0, %v2641
        %2643 = vmatmul.bf16.gmra.mxu0 %v2561
        %v2644 = vpop.f32.mrf.mxu0
        %v2645 = vadd.f32 0.0, %v2644
        %v2646 = vpop.f32.mrf.mxu0
        %v2647 = vadd.f32 0.0, %v2646
        %2648 = vmatmul.bf16.gmra.mxu0 %v2564
        %v2649 = vpop.f32.mrf.mxu0
        %v2650 = vadd.f32 0.0, %v2649
        %v2651 = vpop.f32.mrf.mxu0
        %v2652 = vadd.f32 0.0, %v2651
        %2653 = vmatmul.bf16.gmra.mxu0 %v2567
        %v2654 = vpop.f32.mrf.mxu0
        %v2655 = vadd.f32 0.0, %v2654
        %v2656 = vpop.f32.mrf.mxu0
        %v2657 = vadd.f32 0.0, %v2656
        %2658 = vmatmul.bf16.gmra.mxu0 %v2570
        %v2659 = vpop.f32.mrf.mxu0
        %v2660 = vadd.f32 0.0, %v2659
        %v2661 = vpop.f32.mrf.mxu0
        %v2662 = vadd.f32 0.0, %v2661
        %2663 = vmatmul.bf16.gmra.mxu0 %v2573
        %v2664 = vpop.f32.mrf.mxu0
        %v2665 = vadd.f32 0.0, %v2664
        %v2666 = vpop.f32.mrf.mxu0
        %v2667 = vadd.f32 0.0, %v2666
        %2668 = vmatmul.bf16.gmra.mxu0 %v2576
        %v2669 = vpop.f32.mrf.mxu0
        %v2670 = vadd.f32 0.0, %v2669
        %v2671 = vpop.f32.mrf.mxu0
        %v2672 = vadd.f32 0.0, %v2671
        %2673 = vmatmul.bf16.gmra.mxu0 %v2579
        %v2674 = vpop.f32.mrf.mxu0
        %v2675 = vadd.f32 0.0, %v2674
        %v2676 = vpop.f32.mrf.mxu0
        %v2677 = vadd.f32 0.0, %v2676
        %2678 = vmatmul.bf16.gmra.mxu0 %v2582
        %v2679 = vpop.f32.mrf.mxu0
        %v2680 = vadd.f32 0.0, %v2679
        %v2681 = vpop.f32.mrf.mxu0
        %v2682 = vadd.f32 0.0, %v2681
        %2683 = vmatmul.bf16.gmra.mxu0 %v2585
        %v2684 = vpop.f32.mrf.mxu0
        %v2685 = vadd.f32 0.0, %v2684
        %v2686 = vpop.f32.mrf.mxu0
        %v2687 = vadd.f32 0.0, %v2686
        %2688 = vdwg.mxu0
        %v2689 = vadd.f32 %v2320, %v2600
        %v2690 = vadd.f32 %v2321, %v2602
        %v2691 = vadd.f32 %v2322, %v2605
        %v2692 = vadd.f32 %v2323, %v2607
        %v2693 = vadd.f32 %v2324, %v2610
        %v2694 = vadd.f32 %v2325, %v2612
        %v2695 = vadd.f32 %v2326, %v2615
        %v2696 = vadd.f32 %v2327, %v2617
        %v2697 = vadd.f32 %v2328, %v2620
        %v2698 = vadd.f32 %v2329, %v2622
        %v2699 = vadd.f32 %v2330, %v2625
        %v2700 = vadd.f32 %v2331, %v2627
        %v2701 = vadd.f32 %v2332, %v2630
        %v2702 = vadd.f32 %v2333, %v2632
        %v2703 = vadd.f32 %v2334, %v2635
        %v2704 = vadd.f32 %v2335, %v2637
        %v2705 = vadd.f32 %v2336, %v2640
        %v2706 = vadd.f32 %v2337, %v2642
        %v2707 = vadd.f32 %v2338, %v2645
        %v2708 = vadd.f32 %v2339, %v2647
        %v2709 = vadd.f32 %v2340, %v2650
        %v2710 = vadd.f32 %v2341, %v2652
        %v2711 = vadd.f32 %v2342, %v2655
        %v2712 = vadd.f32 %v2343, %v2657
        %v2713 = vadd.f32 %v2344, %v2660
        %v2714 = vadd.f32 %v2345, %v2662
        %v2715 = vadd.f32 %v2346, %v2665
        %v2716 = vadd.f32 %v2347, %v2667
        %v2717 = vadd.f32 %v2348, %v2670
        %v2718 = vadd.f32 %v2349, %v2672
        %v2719 = vadd.f32 %v2350, %v2675
        %v2720 = vadd.f32 %v2351, %v2677
        %v2721 = vadd.f32 %v2352, %v2680
        %v2722 = vadd.f32 %v2353, %v2682
        %v2723 = vadd.f32 %v2354, %v2685
        %v2724 = vadd.f32 %v2355, %v2687
        %v2725 = vld [vmem:[%s206 + $0x10] sm:$0x8]
        %s2726 = scalar_lea.vmem %s210, 16
        %v2727 = vld [vmem:[%s2726] sm:$0x3]
        %v2729 = vunpack.c.l.b16 %v2725
        %v2730 = vpack.c.b16 %v2072, %v2729
        %vm2731 = vcmask 1044480
        %v2732 = vrot.slane %v2730, 3
        %v2733 = vrot.slane %v2109, 3
        %v2734 = vsel %vm2731, %v2732, %v2733
        %v2735 = vrot.slane %v2110, 3
        %v2736 = vsel %vm2731, %v2733, %v2735
        %v2737 = vrot.slane %v2111, 3
        %v2738 = vsel %vm2731, %v2735, %v2737
        %v2739 = vrot.slane %v2112, 3
        %v2740 = vsel %vm2731, %v2737, %v2739
        %v2741 = vrot.slane %v2113, 3
        %v2742 = vsel %vm2731, %v2739, %v2741
        %v2743 = vrot.slane %v2114, 3
        %v2744 = vsel %vm2731, %v2741, %v2743
        %v2745 = vrot.slane %v2115, 3
        %v2746 = vsel %vm2731, %v2743, %v2745
        %v2747 = vrot.slane %v2116, 3
        %v2748 = vsel %vm2731, %v2745, %v2747
        %v2749 = vrot.slane %v2117, 3
        %v2750 = vsel %vm2731, %v2747, %v2749
        %v2751 = vrot.slane %v2118, 3
        %v2752 = vsel %vm2731, %v2749, %v2751
        %v2753 = vrot.slane %v2119, 3
        %v2754 = vsel %vm2731, %v2751, %v2753
        %v2755 = vrot.slane %v2120, 3
        %v2756 = vsel %vm2731, %v2753, %v2755
        %v2757 = vrot.slane %v2121, 3
        %v2758 = vsel %vm2731, %v2755, %v2757
        %v2759 = vrot.slane %v2122, 3
        %v2760 = vsel %vm2731, %v2757, %v2759
        %v2761 = vrot.slane %v2123, 3
        %v2762 = vsel %vm2731, %v2759, %v2761
        %v2763 = vrot.slane %v2124, 3
        %v2764 = vsel %vm2731, %v2761, %v2763
        %v2765 = vrot.slane %v2125, 3
        %v2766 = vsel %vm2731, %v2763, %v2765
        %v2767 = vrot.slane %v2361, 3
        %v2768 = vsel %vm2731, %v2765, %v2767
        %v2770 = vsel %vm497, %v2734, 0
        %v2773 = vsel %vm497, %v2736, 0
        %v2776 = vsel %vm497, %v2738, 0
        %v2779 = vsel %vm497, %v2740, 0
        %v2782 = vsel %vm497, %v2742, 0
        %v2785 = vsel %vm497, %v2744, 0
        %v2788 = vsel %vm497, %v2746, 0
        %v2791 = vsel %vm497, %v2748, 0
        %v2794 = vsel %vm497, %v2750, 0
        %v2797 = vsel %vm497, %v2752, 0
        %v2800 = vsel %vm497, %v2754, 0
        %v2803 = vsel %vm497, %v2756, 0
        %v2806 = vsel %vm497, %v2758, 0
        %v2809 = vsel %vm497, %v2760, 0
        %v2812 = vsel %vm497, %v2762, 0
        %v2815 = vsel %vm497, %v2764, 0
        %v2818 = vsel %vm497, %v2766, 0
        %v2821 = vsel %vm497, %v2768, 0
        %v2824 = vsel %vm552, %v2727, 0
        %2826 = vmatpush.bf16.msra.mxu0 0
        %2827 = vmatpush.bf16.msra.mxu0 0
        %2828 = vmatpush.bf16.msra.mxu0 0
        %2829 = vmatpush.bf16.msra.mxu0 0
        %2830 = vmatpush.bf16.msra.mxu0 0
        %2831 = vmatpush.bf16.msra.mxu0 0
        %2832 = vmatpush.bf16.msra.mxu0 0
        %2833 = vmatpush.bf16.msra.mxu0 %v2824
        %2834 = vmatmul.bf16.gmra.mxu0 %v2770
        %v2835 = vpop.f32.mrf.mxu0
        %v2836 = vadd.f32 0.0, %v2835
        %v2837 = vpop.f32.mrf.mxu0
        %v2838 = vadd.f32 0.0, %v2837
        %2839 = vmatmul.bf16.gmra.mxu0 %v2773
        %v2840 = vpop.f32.mrf.mxu0
        %v2841 = vadd.f32 0.0, %v2840
        %v2842 = vpop.f32.mrf.mxu0
        %v2843 = vadd.f32 0.0, %v2842
        %2844 = vmatmul.bf16.gmra.mxu0 %v2776
        %v2845 = vpop.f32.mrf.mxu0
        %v2846 = vadd.f32 0.0, %v2845
        %v2847 = vpop.f32.mrf.mxu0
        %v2848 = vadd.f32 0.0, %v2847
        %2849 = vmatmul.bf16.gmra.mxu0 %v2779
        %v2850 = vpop.f32.mrf.mxu0
        %v2851 = vadd.f32 0.0, %v2850
        %v2852 = vpop.f32.mrf.mxu0
        %v2853 = vadd.f32 0.0, %v2852
        %2854 = vmatmul.bf16.gmra.mxu0 %v2782
        %v2855 = vpop.f32.mrf.mxu0
        %v2856 = vadd.f32 0.0, %v2855
        %v2857 = vpop.f32.mrf.mxu0
        %v2858 = vadd.f32 0.0, %v2857
        %2859 = vmatmul.bf16.gmra.mxu0 %v2785
        %v2860 = vpop.f32.mrf.mxu0
        %v2861 = vadd.f32 0.0, %v2860
        %v2862 = vpop.f32.mrf.mxu0
        %v2863 = vadd.f32 0.0, %v2862
        %2864 = vmatmul.bf16.gmra.mxu0 %v2788
        %v2865 = vpop.f32.mrf.mxu0
        %v2866 = vadd.f32 0.0, %v2865
        %v2867 = vpop.f32.mrf.mxu0
        %v2868 = vadd.f32 0.0, %v2867
        %2869 = vmatmul.bf16.gmra.mxu0 %v2791
        %v2870 = vpop.f32.mrf.mxu0
        %v2871 = vadd.f32 0.0, %v2870
        %v2872 = vpop.f32.mrf.mxu0
        %v2873 = vadd.f32 0.0, %v2872
        %2874 = vmatmul.bf16.gmra.mxu0 %v2794
        %v2875 = vpop.f32.mrf.mxu0
        %v2876 = vadd.f32 0.0, %v2875
        %v2877 = vpop.f32.mrf.mxu0
        %v2878 = vadd.f32 0.0, %v2877
        %2879 = vmatmul.bf16.gmra.mxu0 %v2797
        %v2880 = vpop.f32.mrf.mxu0
        %v2881 = vadd.f32 0.0, %v2880
        %v2882 = vpop.f32.mrf.mxu0
        %v2883 = vadd.f32 0.0, %v2882
        %2884 = vmatmul.bf16.gmra.mxu0 %v2800
        %v2885 = vpop.f32.mrf.mxu0
        %v2886 = vadd.f32 0.0, %v2885
        %v2887 = vpop.f32.mrf.mxu0
        %v2888 = vadd.f32 0.0, %v2887
        %2889 = vmatmul.bf16.gmra.mxu0 %v2803
        %v2890 = vpop.f32.mrf.mxu0
        %v2891 = vadd.f32 0.0, %v2890
        %v2892 = vpop.f32.mrf.mxu0
        %v2893 = vadd.f32 0.0, %v2892
        %2894 = vmatmul.bf16.gmra.mxu0 %v2806
        %v2895 = vpop.f32.mrf.mxu0
        %v2896 = vadd.f32 0.0, %v2895
        %v2897 = vpop.f32.mrf.mxu0
        %v2898 = vadd.f32 0.0, %v2897
        %2899 = vmatmul.bf16.gmra.mxu0 %v2809
        %v2900 = vpop.f32.mrf.mxu0
        %v2901 = vadd.f32 0.0, %v2900
        %v2902 = vpop.f32.mrf.mxu0
        %v2903 = vadd.f32 0.0, %v2902
        %2904 = vmatmul.bf16.gmra.mxu0 %v2812
        %v2905 = vpop.f32.mrf.mxu0
        %v2906 = vadd.f32 0.0, %v2905
        %v2907 = vpop.f32.mrf.mxu0
        %v2908 = vadd.f32 0.0, %v2907
        %2909 = vmatmul.bf16.gmra.mxu0 %v2815
        %v2910 = vpop.f32.mrf.mxu0
        %v2911 = vadd.f32 0.0, %v2910
        %v2912 = vpop.f32.mrf.mxu0
        %v2913 = vadd.f32 0.0, %v2912
        %2914 = vmatmul.bf16.gmra.mxu0 %v2818
        %v2915 = vpop.f32.mrf.mxu0
        %v2916 = vadd.f32 0.0, %v2915
        %v2917 = vpop.f32.mrf.mxu0
        %v2918 = vadd.f32 0.0, %v2917
        %2919 = vmatmul.bf16.gmra.mxu0 %v2821
        %v2920 = vpop.f32.mrf.mxu0
        %v2921 = vadd.f32 0.0, %v2920
        %v2922 = vpop.f32.mrf.mxu0
        %v2923 = vadd.f32 0.0, %v2922
        %2924 = vdwg.mxu0
        %v2925 = vadd.f32 %v2689, %v2836
        %v2926 = vadd.f32 %v2690, %v2838
        %v2927 = vadd.f32 %v2691, %v2841
        %v2928 = vadd.f32 %v2692, %v2843
        %v2929 = vadd.f32 %v2693, %v2846
        %v2930 = vadd.f32 %v2694, %v2848
        %v2931 = vadd.f32 %v2695, %v2851
        %v2932 = vadd.f32 %v2696, %v2853
        %v2933 = vadd.f32 %v2697, %v2856
        %v2934 = vadd.f32 %v2698, %v2858
        %v2935 = vadd.f32 %v2699, %v2861
        %v2936 = vadd.f32 %v2700, %v2863
        %v2937 = vadd.f32 %v2701, %v2866
        %v2938 = vadd.f32 %v2702, %v2868
        %v2939 = vadd.f32 %v2703, %v2871
        %v2940 = vadd.f32 %v2704, %v2873
        %v2941 = vadd.f32 %v2705, %v2876
        %v2942 = vadd.f32 %v2706, %v2878
        %v2943 = vadd.f32 %v2707, %v2881
        %v2944 = vadd.f32 %v2708, %v2883
        %v2945 = vadd.f32 %v2709, %v2886
        %v2946 = vadd.f32 %v2710, %v2888
        %v2947 = vadd.f32 %v2711, %v2891
        %v2948 = vadd.f32 %v2712, %v2893
        %v2949 = vadd.f32 %v2713, %v2896
        %v2950 = vadd.f32 %v2714, %v2898
        %v2951 = vadd.f32 %v2715, %v2901
        %v2952 = vadd.f32 %v2716, %v2903
        %v2953 = vadd.f32 %v2717, %v2906
        %v2954 = vadd.f32 %v2718, %v2908
        %v2955 = vadd.f32 %v2719, %v2911
        %v2956 = vadd.f32 %v2720, %v2913
        %v2957 = vadd.f32 %v2721, %v2916
        %v2958 = vadd.f32 %v2722, %v2918
        %v2959 = vadd.f32 %v2723, %v2921
        %v2960 = vadd.f32 %v2724, %v2923
        %v2961 = vld [vmem:[%s213] sm:$0x1]
        %v2963 = vperm.slane %v2961, 0
        %v2965 = vadd.f32 %v2925, %v2963
        %v2966 = vadd.f32 %v2926, %v2963
        %v2967 = vadd.f32 %v2927, %v2963
        %v2968 = vadd.f32 %v2928, %v2963
        %v2969 = vadd.f32 %v2929, %v2963
        %v2970 = vadd.f32 %v2930, %v2963
        %v2971 = vadd.f32 %v2931, %v2963
        %v2972 = vadd.f32 %v2932, %v2963
        %v2973 = vadd.f32 %v2933, %v2963
        %v2974 = vadd.f32 %v2934, %v2963
        %v2975 = vadd.f32 %v2935, %v2963
        %v2976 = vadd.f32 %v2936, %v2963
        %v2977 = vadd.f32 %v2937, %v2963
        %v2978 = vadd.f32 %v2938, %v2963
        %v2979 = vadd.f32 %v2939, %v2963
        %v2980 = vadd.f32 %v2940, %v2963
        %v2981 = vadd.f32 %v2941, %v2963
        %v2982 = vadd.f32 %v2942, %v2963
        %v2983 = vadd.f32 %v2943, %v2963
        %v2984 = vadd.f32 %v2944, %v2963
        %v2985 = vadd.f32 %v2945, %v2963
        %v2986 = vadd.f32 %v2946, %v2963
        %v2987 = vadd.f32 %v2947, %v2963
        %v2988 = vadd.f32 %v2948, %v2963
        %v2989 = vadd.f32 %v2949, %v2963
        %v2990 = vadd.f32 %v2950, %v2963
        %v2991 = vadd.f32 %v2951, %v2963
        %v2992 = vadd.f32 %v2952, %v2963
        %v2993 = vadd.f32 %v2953, %v2963
        %v2994 = vadd.f32 %v2954, %v2963
        %v2995 = vadd.f32 %v2955, %v2963
        %v2996 = vadd.f32 %v2956, %v2963
        %v2997 = vadd.f32 %v2957, %v2963
        %v2998 = vadd.f32 %v2958, %v2963
        %v2999 = vadd.f32 %v2959, %v2963
        %v3000 = vadd.f32 %v2960, %v2963
        %vm3001 = vcmp.gt.f32.partialorder %v2965, 0.0
        %vm3002 = vcmp.gt.f32.partialorder %v2966, 0.0
        %vm3003 = vcmp.gt.f32.partialorder %v2967, 0.0
        %vm3004 = vcmp.gt.f32.partialorder %v2968, 0.0
        %vm3005 = vcmp.gt.f32.partialorder %v2969, 0.0
        %vm3006 = vcmp.gt.f32.partialorder %v2970, 0.0
        %vm3007 = vcmp.gt.f32.partialorder %v2971, 0.0
        %vm3008 = vcmp.gt.f32.partialorder %v2972, 0.0
        %vm3009 = vcmp.gt.f32.partialorder %v2973, 0.0
        %vm3010 = vcmp.gt.f32.partialorder %v2974, 0.0
        %vm3011 = vcmp.gt.f32.partialorder %v2975, 0.0
        %vm3012 = vcmp.gt.f32.partialorder %v2976, 0.0
        %vm3013 = vcmp.gt.f32.partialorder %v2977, 0.0
        %vm3014 = vcmp.gt.f32.partialorder %v2978, 0.0
        %vm3015 = vcmp.gt.f32.partialorder %v2979, 0.0
        %vm3016 = vcmp.gt.f32.partialorder %v2980, 0.0
        %vm3017 = vcmp.gt.f32.partialorder %v2981, 0.0
        %vm3018 = vcmp.gt.f32.partialorder %v2982, 0.0
        %vm3019 = vcmp.gt.f32.partialorder %v2983, 0.0
        %vm3020 = vcmp.gt.f32.partialorder %v2984, 0.0
        %vm3021 = vcmp.gt.f32.partialorder %v2985, 0.0
        %vm3022 = vcmp.gt.f32.partialorder %v2986, 0.0
        %vm3023 = vcmp.gt.f32.partialorder %v2987, 0.0
        %vm3024 = vcmp.gt.f32.partialorder %v2988, 0.0
        %vm3025 = vcmp.gt.f32.partialorder %v2989, 0.0
        %vm3026 = vcmp.gt.f32.partialorder %v2990, 0.0
        %vm3027 = vcmp.gt.f32.partialorder %v2991, 0.0
        %vm3028 = vcmp.gt.f32.partialorder %v2992, 0.0
        %vm3029 = vcmp.gt.f32.partialorder %v2993, 0.0
        %vm3030 = vcmp.gt.f32.partialorder %v2994, 0.0
        %vm3031 = vcmp.gt.f32.partialorder %v2995, 0.0
        %vm3032 = vcmp.gt.f32.partialorder %v2996, 0.0
        %vm3033 = vcmp.gt.f32.partialorder %v2997, 0.0
        %vm3034 = vcmp.gt.f32.partialorder %v2998, 0.0
        %vm3035 = vcmp.gt.f32.partialorder %v2999, 0.0
        %vm3036 = vcmp.gt.f32.partialorder %v3000, 0.0
        %v3037 = vmul.f32 %v2965, 0.1
        %v3038 = vmul.f32 %v2966, 0.1
        %v3039 = vmul.f32 %v2967, 0.1
        %v3040 = vmul.f32 %v2968, 0.1
        %v3041 = vmul.f32 %v2969, 0.1
        %v3042 = vmul.f32 %v2970, 0.1
        %v3043 = vmul.f32 %v2971, 0.1
        %v3044 = vmul.f32 %v2972, 0.1
        %v3045 = vmul.f32 %v2973, 0.1
        %v3046 = vmul.f32 %v2974, 0.1
        %v3047 = vmul.f32 %v2975, 0.1
        %v3048 = vmul.f32 %v2976, 0.1
        %v3049 = vmul.f32 %v2977, 0.1
        %v3050 = vmul.f32 %v2978, 0.1
        %v3051 = vmul.f32 %v2979, 0.1
        %v3052 = vmul.f32 %v2980, 0.1
        %v3053 = vmul.f32 %v2981, 0.1
        %v3054 = vmul.f32 %v2982, 0.1
        %v3055 = vmul.f32 %v2983, 0.1
        %v3056 = vmul.f32 %v2984, 0.1
        %v3057 = vmul.f32 %v2985, 0.1
        %v3058 = vmul.f32 %v2986, 0.1
        %v3059 = vmul.f32 %v2987, 0.1
        %v3060 = vmul.f32 %v2988, 0.1
        %v3061 = vmul.f32 %v2989, 0.1
        %v3062 = vmul.f32 %v2990, 0.1
        %v3063 = vmul.f32 %v2991, 0.1
        %v3064 = vmul.f32 %v2992, 0.1
        %v3065 = vmul.f32 %v2993, 0.1
        %v3066 = vmul.f32 %v2994, 0.1
        %v3067 = vmul.f32 %v2995, 0.1
        %v3068 = vmul.f32 %v2996, 0.1
        %v3069 = vmul.f32 %v2997, 0.1
        %v3070 = vmul.f32 %v2998, 0.1
        %v3071 = vmul.f32 %v2999, 0.1
        %v3072 = vmul.f32 %v3000, 0.1
        %v3073 = vsel %vm3001, %v2965, %v3037
        %v3074 = vsel %vm3002, %v2966, %v3038
        %v3075 = vsel %vm3003, %v2967, %v3039
        %v3076 = vsel %vm3004, %v2968, %v3040
        %v3077 = vsel %vm3005, %v2969, %v3041
        %v3078 = vsel %vm3006, %v2970, %v3042
        %v3079 = vsel %vm3007, %v2971, %v3043
        %v3080 = vsel %vm3008, %v2972, %v3044
        %v3081 = vsel %vm3009, %v2973, %v3045
        %v3082 = vsel %vm3010, %v2974, %v3046
        %v3083 = vsel %vm3011, %v2975, %v3047
        %v3084 = vsel %vm3012, %v2976, %v3048
        %v3085 = vsel %vm3013, %v2977, %v3049
        %v3086 = vsel %vm3014, %v2978, %v3050
        %v3087 = vsel %vm3015, %v2979, %v3051
        %v3088 = vsel %vm3016, %v2980, %v3052
        %v3089 = vsel %vm3017, %v2981, %v3053
        %v3090 = vsel %vm3018, %v2982, %v3054
        %v3091 = vsel %vm3019, %v2983, %v3055
        %v3092 = vsel %vm3020, %v2984, %v3056
        %v3093 = vsel %vm3021, %v2985, %v3057
        %v3094 = vsel %vm3022, %v2986, %v3058
        %v3095 = vsel %vm3023, %v2987, %v3059
        %v3096 = vsel %vm3024, %v2988, %v3060
        %v3097 = vsel %vm3025, %v2989, %v3061
        %v3098 = vsel %vm3026, %v2990, %v3062
        %v3099 = vsel %vm3027, %v2991, %v3063
        %v3100 = vsel %vm3028, %v2992, %v3064
        %v3101 = vsel %vm3029, %v2993, %v3065
        %v3102 = vsel %vm3030, %v2994, %v3066
        %v3103 = vsel %vm3031, %v2995, %v3067
        %v3104 = vsel %vm3032, %v2996, %v3068
        %v3105 = vsel %vm3033, %v2997, %v3069
        %v3106 = vsel %vm3034, %v2998, %v3070
        %v3107 = vsel %vm3035, %v2999, %v3071
        %v3108 = vsel %vm3036, %v3000, %v3072
        %3109 = vst [vmem:[%s201] sm:$0xff] %v3073
        %3110 = vst [vmem:[%s201 + $0x8] sm:$0xff] %v3074
        %3111 = vst [vmem:[%s201 + $0x10] sm:$0xff] %v3075
        %3112 = vst [vmem:[%s201 + $0x18] sm:$0xff] %v3076
        %3113 = vst [vmem:[%s201 + $0x20] sm:$0xff] %v3077
        %3114 = vst [vmem:[%s201 + $0x28] sm:$0xff] %v3078
        %3115 = vst [vmem:[%s201 + $0x30] sm:$0xff] %v3079
        %3116 = vst [vmem:[%s201 + $0x38] sm:$0xff] %v3080
        %3117 = vst [vmem:[%s201 + $0x40] sm:$0xff] %v3081
        %3118 = vst [vmem:[%s201 + $0x48] sm:$0xff] %v3082
        %3119 = vst [vmem:[%s201 + $0x50] sm:$0xff] %v3083
        %3120 = vst [vmem:[%s201 + $0x58] sm:$0xff] %v3084
        %3121 = vst [vmem:[%s201 + $0x60] sm:$0xff] %v3085
        %3122 = vst [vmem:[%s201 + $0x68] sm:$0xff] %v3086
        %3123 = vst [vmem:[%s201 + $0x70] sm:$0xff] %v3087
        %3124 = vst [vmem:[%s201 + $0x78] sm:$0xff] %v3088
        %3125 = vst [vmem:[%s201 + $0x80] sm:$0xff] %v3089
        %3126 = vst [vmem:[%s201 + $0x88] sm:$0xff] %v3090
        %3127 = vst [vmem:[%s201 + $0x90] sm:$0xff] %v3091
        %3128 = vst [vmem:[%s201 + $0x98] sm:$0xff] %v3092
        %3129 = vst [vmem:[%s201 + $0xa0] sm:$0xff] %v3093
        %3130 = vst [vmem:[%s201 + $0xa8] sm:$0xff] %v3094
        %3131 = vst [vmem:[%s201 + $0xb0] sm:$0xff] %v3095
        %3132 = vst [vmem:[%s201 + $0xb8] sm:$0xff] %v3096
        %3133 = vst [vmem:[%s201 + $0xc0] sm:$0xff] %v3097
        %3134 = vst [vmem:[%s201 + $0xc8] sm:$0xff] %v3098
        %3135 = vst [vmem:[%s201 + $0xd0] sm:$0xff] %v3099
        %3136 = vst [vmem:[%s201 + $0xd8] sm:$0xff] %v3100
        %3137 = vst [vmem:[%s201 + $0xe0] sm:$0xff] %v3101
        %3138 = vst [vmem:[%s201 + $0xe8] sm:$0xff] %v3102
        %3139 = vst [vmem:[%s201 + $0xf0] sm:$0xff] %v3103
        %3140 = vst [vmem:[%s201 + $0xf8] sm:$0xff] %v3104
        %3141 = vst [vmem:[%s201 + $0x100] sm:$0xff] %v3105
        %3142 = vst [vmem:[%s201 + $0x108] sm:$0xff] %v3106
        %3143 = vst [vmem:[%s201 + $0x110] sm:$0xff] %v3107
        %3144 = vst [vmem:[%s201 + $0x118] sm:$0xff] %v3108
        %s3145 = sand.u32 %s117, 1
        %s3146 = scalar_lea.sflag [#allocation3], %s3145
        %s3147 = sand.u32 %s117, 1
        %s3148 = smul.addr %s3147, 288
        %s3149 = scalar_lea.vmem [#allocation2], %s3148
        // Predicated region
        $region33: #{tpu_custom_call.1} parent=31 // pred_check
          %p3150 = pneg %p127
        $region34: #{tpu_custom_call.1} parent=31 // pred_check_branch
          %3152 = sbr.rel (%p3150) target = $region36
        $region35: #{tpu_custom_call.1} parent=31 // pred_region
          %3154 = vsyncadd %s3146, 0
          %s3155 = smul.addr %s21, 36
          %s3156 = sadd.s32 %s22, %s3155
          %s3157 = smul.addr %s3156, 8
          %s3158 = scalar_lea.hbm %s3, %s3157
          %s3159 = sshll.u32 %s3149, 4
          %s3160 = int_to_ptr.vmem [resolvable:$true] %s3159
          %s3161 = sshll.u32 %s3158, 4
          %s3162 = int_to_ptr.hbm [resolvable:$true] %s3161
          %3167 = dma.vmem_to_hbm [thread:$0]  %s3160, 4608, %s3162, %s3146, 128, 128, 8
        $region36: #{tpu_custom_call.1} parent=31 // pred_fallthru
          _
      $region32: #{tpu_custom_call.1} parent=5 // pred_fallthru
        _
      %p3168 = scmp.le.s32.totalorder 2, %s12
      // Predicated region
      $region37: #{tpu_custom_call.1} parent=5 // pred_check
        %p3169 = pneg %p3168
      $region38: #{tpu_custom_call.1} parent=5 // pred_check_branch
        %3171 = sbr.rel (%p3169) target = $region40
      $region39: #{tpu_custom_call.1} parent=5 // pred_region
        %s3172 = ssub.s32 %s12, 2
        // Predicated region
        $region41: #{tpu_custom_call.1} parent=39 // pred_check
          %p3173 = pneg %p133
        $region42: #{tpu_custom_call.1} parent=39 // pred_check_branch
          %3175 = sbr.rel (%p3173) target = $region44
        $region43: #{tpu_custom_call.1} parent=39 // pred_region
          %s3176 = sand.u32 %s118, 1
          %s3177 = scalar_lea.sflag [#allocation3], %s3176
          %s3178 = sand.u32 %s118, 1
          %s3179 = smul.addr %s3178, 288
          %s3180 = scalar_lea.vmem [#allocation2], %s3179
          %3182 = dma.done %s3177, 4608
        $region44: #{tpu_custom_call.1} parent=39 // pred_fallthru
          _
      $region40: #{tpu_custom_call.1} parent=5 // pred_fallthru
        _
    $region6: #{tpu_custom_call.1} parent=1 // loop_footer
      %s16 = sadd.s32 1, %s12
    $region7: #{tpu_custom_call.1} parent=1 // loop_footer_branch
      %11 = sbr.rel target = $region3
    $region8: #{tpu_custom_call.1} parent=1 // loop_exit
      _
    %3183 = vsyncpa [#allocation3], 1
    %s3184 = scalar_lea.sflag [#allocation3], 1
    %3185 = vsyncpa %s3184, 1

</llo_original>
